<compile_context>
chip_gen: v7x
topology: tpu7x:2x2x1
jax: 0.10.0
libtpu: 0.0.40
codegen_flags: <defaults>
</compile_context>

<pallas_src>
import functools
import math

import jax
import jax.numpy as jnp
from jax.experimental import pallas as pl
from jax.experimental.pallas import tpu as pltpu


def _conv_taps(H, W):
    """Static (sy, sx, roll amount) for the 9 taps of a 3x3 'SAME' conv when the
    spatial dims are flattened to a single H*W lane axis."""
    HW = H * W
    taps = []
    for dy in range(3):
        for dx in range(3):
            sy, sx = dy - 1, dx - 1
            d = sy * W + sx                 # want shifted[p] = x[p + d]
            taps.append((sy, sx, (-d) % HW))  # jnp.roll semantics: out[p]=x[p-s]
    return taps


def fuse_out_kernel(ir_ref, ie_ref, vi_ref, ve_ref,
                    w1a_ref, w1b_ref, w1c_ref, w1d_ref, b1_ref,
                    w2_ref, b2_ref, w3_ref, b3_ref,
                    o_ref, *, H, W):
    HW = H * W

    # ---- conv1: 1x1, 18 -> 16, ReLU.  One (16, Cg) @ (Cg, H*W) matmul per
    #      input group == the channel concat folded into the weights. ---------
    x1 = jnp.dot(w1a_ref[...], ir_ref[0], preferred_element_type=jnp.float32)
    x1 = x1 + jnp.dot(w1b_ref[...], ie_ref[0], preferred_element_type=jnp.float32)
    x1 = x1 + jnp.dot(w1c_ref[...], vi_ref[0], preferred_element_type=jnp.float32)
    x1 = x1 + jnp.dot(w1d_ref[...], ve_ref[0], preferred_element_type=jnp.float32)
    x1 = jnp.maximum(x1 + b1_ref[...], 0.0)                    # (16, HW)

    # ---- per-tap shift machinery: roll along the flattened spatial (lane)
    #      axis + float border masks.  No padded scratch, no reload. ----------
    fp = jax.lax.broadcasted_iota(jnp.int32, (1, HW), 1)
    col = fp % W
    tap_info = []
    for (sy, sx, r) in _conv_taps(H, W):
        conds = []
        if sx > 0:
            conds.append(col < (W - sx))
        if sx < 0:
            conds.append(col >= (-sx))
        if sy > 0:
            conds.append(fp < (H - sy) * W)
        if sy < 0:
            conds.append(fp >= (-sy) * W)
        mask = None
        for c in conds:
            mask = c if mask is None else (mask & c)
        maskf = None if mask is None else mask.astype(jnp.float32)
        tap_info.append((r, maskf))

    def shifted(x, r, maskf):
        z = x if r == 0 else pltpu.roll(x, r, axis=1)
        return z if maskf is None else z * maskf

    # ---- conv2: 3x3 pad=1, 16 -> 8, ReLU: 9 shifted (8,16)@(16,HW) matmuls
    #      with lane-dense (8, HW) results. -----------------------------------
    acc2 = jnp.zeros((8, HW), jnp.float32)
    for k, (r, maskf) in enumerate(tap_info):
        acc2 = acc2 + jnp.dot(w2_ref[k], shifted(x1, r, maskf),
                              preferred_element_type=jnp.float32)
    x2 = jnp.maximum(acc2 + b2_ref[...], 0.0)                  # (8, HW)

    # ---- conv3: 3x3 pad=1, 8 -> 1, Hardtanh: single-output-channel conv on
    #      the VPU (per-channel broadcast MAC) + one cross-sublane reduce. ----
    acc3 = jnp.zeros((8, HW), jnp.float32)
    for k, (r, maskf) in enumerate(tap_info):
        acc3 = acc3 + w3_ref[k] * shifted(x2, r, maskf)        # (8,1) * (8,HW)
    y = jnp.sum(acc3, axis=0, keepdims=True) + b3_ref[0]       # (1, HW)
    o_ref[0] = jnp.clip(y, -1.0, 1.0).astype(o_ref.dtype)      # Hardtanh [-1,1]


def fuse_out_pallas(ir, vi, ir_embed, vi_embed, params):
    """Inputs NCHW: ir/vi (N,3,H,W), ir_embed/vi_embed (N,6,H,W) -> (N,1,H,W)."""
    (w1a, w1b, w1c, w1d, b1, w2, b2, w3, b3) = params
    N, _, H, W = ir.shape
    HW = H * W

    # (N,C,H,W) -> (N,C,H*W) is a free row-major reshape (no copy); the
    # flattened spatial axis becomes the dense lane dimension inside the kernel.
    def flat(t):
        return t.reshape(N, t.shape[1], HW)

    # Rough per-step VMEM need: dbl-buffered 18-ch input + 1-ch output + temps.
    need = 4 * HW * (2 * 19 + 64)
    vmem_limit = int(min(128 * 1024 * 1024, max(32 * 1024 * 1024, 2 * need)))

    kernel = functools.partial(fuse_out_kernel, H=H, W=W)
    y = pl.pallas_call(
        kernel,
        out_shape=jax.ShapeDtypeStruct((N, 1, HW), ir.dtype),
        grid_spec=pltpu.PrefetchScalarGridSpec(
            num_scalar_prefetch=0,
            grid=(N,),
            in_specs=[
                pl.BlockSpec((1, 3, HW), lambda n: (n, 0, 0)),   # ir
                pl.BlockSpec((1, 6, HW), lambda n: (n, 0, 0)),   # ir_embed
                pl.BlockSpec((1, 3, HW), lambda n: (n, 0, 0)),   # vi
                pl.BlockSpec((1, 6, HW), lambda n: (n, 0, 0)),   # vi_embed
                pl.BlockSpec((16, 3), lambda n: (0, 0)),         # w1 (ir cols)
                pl.BlockSpec((16, 6), lambda n: (0, 0)),         # w1 (ir_embed)
                pl.BlockSpec((16, 3), lambda n: (0, 0)),         # w1 (vi cols)
                pl.BlockSpec((16, 6), lambda n: (0, 0)),         # w1 (vi_embed)
                pl.BlockSpec((16, 1), lambda n: (0, 0)),         # b1
                pl.BlockSpec((9, 8, 16), lambda n: (0, 0, 0)),   # w2 (tap,Co,Ci)
                pl.BlockSpec((8, 1), lambda n: (0, 0)),          # b2
                pl.BlockSpec((9, 8, 1), lambda n: (0, 0, 0)),    # w3 (tap,Ci,1)
                pl.BlockSpec(memory_space=pltpu.MemorySpace.SMEM),  # b3 scalar
            ],
            out_specs=pl.BlockSpec((1, 1, HW), lambda n: (n, 0, 0)),
        ),
        compiler_params=pltpu.CompilerParams(
            dimension_semantics=("parallel",),
            vmem_limit_bytes=vmem_limit),
    )(flat(ir), flat(ir_embed), flat(vi), flat(vi_embed),
      w1a, w1b, w1c, w1d, b1, w2, b2, w3, b3)
    return y.reshape(N, 1, H, W)


def fuse_out_forward(ir, vi, ir_embed, vi_embed, params):
    """Mirrors Fuse_out.forward: NCHW in, NCHW out."""
    return fuse_out_pallas(ir, vi, ir_embed, vi_embed, params)


# ---------------------------------------------------------------------------
# Parameter construction (kaiming_normal_, mode='fan_out', relu; bias = 0),
# stored directly in kernel layout:
#   w1 groups: (16,3)/(16,6)/(16,3)/(16,6)   (Cout, Cin-group)
#   w2: (9, 8, 16)  = (tap=dy*3+dx, Cout, Cin)
#   w3: (9, 8, 1)   = (tap, Cin, 1)
# ---------------------------------------------------------------------------
def make_params(key):
    k1, k2, k3 = jax.random.split(key, 3)
    std1 = math.sqrt(2.0 / (16 * 1 * 1))
    w1 = jax.random.normal(k1, (16, 18), jnp.float32) * std1      # (Cout, Cin)
    b1 = jnp.zeros((16, 1), jnp.float32)
    std2 = math.sqrt(2.0 / (8 * 3 * 3))
    w2 = jax.random.normal(k2, (3, 3, 8, 16), jnp.float32) * std2  # (kh,kw,Co,Ci)
    b2 = jnp.zeros((8, 1), jnp.float32)
    std3 = math.sqrt(2.0 / (1 * 3 * 3))
    w3 = jax.random.normal(k3, (3, 3, 8), jnp.float32) * std3      # (kh,kw,Ci)
    b3 = jnp.zeros((1,), jnp.float32)
    return (w1[:, 0:3], w1[:, 3:9], w1[:, 9:12], w1[:, 12:18], b1,
            w2.reshape(9, 8, 16), b2, w3.reshape(9, 8, 1), b3)


# ---------------------------------------------------------------------------
# Pure-JAX reference (lax.conv) used as a correctness check.
# ---------------------------------------------------------------------------
def fuse_out_ref(ir, vi, ir_embed, vi_embed, params):
    (w1a, w1b, w1c, w1d, b1, w2k, b2, w3k, b3) = params
    w1 = jnp.concatenate([w1a, w1b, w1c, w1d], axis=1)             # (16, 18)
    w1_hwio = w1.T.reshape(1, 1, 18, 16)
    w2_hwio = jnp.transpose(w2k.reshape(3, 3, 8, 16), (0, 1, 3, 2))  # (3,3,16,8)
    w3_hwio = w3k.reshape(3, 3, 8, 1)
    dn = ("NHWC", "HWIO", "NHWC")
    hi = jax.lax.Precision.HIGHEST

    x = jnp.concatenate([ir, ir_embed, vi, vi_embed], axis=1)      # (N, 18, H, W)
    x = jnp.transpose(x, (0, 2, 3, 1))                             # -> NHWC
    x = jax.lax.conv_general_dilated(x, w1_hwio, (1, 1), "SAME",
                                     dimension_numbers=dn, precision=hi)
    x = jnp.maximum(x + b1.reshape(1, 1, 1, 16), 0.0)
    x = jax.lax.conv_general_dilated(x, w2_hwio, (1, 1), "SAME",
                                     dimension_numbers=dn, precision=hi)
    x = jnp.maximum(x + b2.reshape(1, 1, 1, 8), 0.0)
    x = jax.lax.conv_general_dilated(x, w3_hwio, (1, 1), "SAME",
                                     dimension_numbers=dn, precision=hi)
    x = jnp.clip(x + b3.reshape(1, 1, 1, 1), -1.0, 1.0)
    return jnp.transpose(x, (0, 3, 1, 2))                          # -> NCHW


if __name__ == "__main__":
    key = jax.random.PRNGKey(0)
    kp, ki, kv, kie, kve = jax.random.split(key, 5)

    N, H, W = 2, 16, 16
    # 3 + 6 + 3 + 6 = 18 channels, matching Conv2d(18, 16, 1x1).
    ir = jax.random.normal(ki, (N, 3, H, W), jnp.float32)
    vi = jax.random.normal(kv, (N, 3, H, W), jnp.float32)
    ir_embed = jax.random.normal(kie, (N, 6, H, W), jnp.float32)
    vi_embed = jax.random.normal(kve, (N, 6, H, W), jnp.float32)

    params = make_params(kp)

    out = fuse_out_forward(ir, vi, ir_embed, vi_embed, params)
    out = jax.block_until_ready(out)
    assert out.shape == (N, 1, H, W), out.shape

    ref = jax.block_until_ready(fuse_out_ref(ir, vi, ir_embed, vi_embed, params))
    assert jnp.allclose(out, ref, atol=1e-4, rtol=1e-4), float(
        jnp.max(jnp.abs(out - ref)))

    print("KERNEL_OK")
</pallas_src>

<mosaic_0001>
module attributes {stable_mosaic.version = 11 : i64} {
  func.func @fuse_out_kernel(%arg0: i32, %arg1: memref<1x3x256xf32, #tpu.memory_space<vmem>>, %arg2: memref<1x6x256xf32, #tpu.memory_space<vmem>>, %arg3: memref<1x3x256xf32, #tpu.memory_space<vmem>>, %arg4: memref<1x6x256xf32, #tpu.memory_space<vmem>>, %arg5: memref<16x3xf32, #tpu.memory_space<vmem>>, %arg6: memref<16x6xf32, #tpu.memory_space<vmem>>, %arg7: memref<16x3xf32, #tpu.memory_space<vmem>>, %arg8: memref<16x6xf32, #tpu.memory_space<vmem>>, %arg9: memref<16x1xf32, #tpu.memory_space<vmem>>, %arg10: memref<9x8x16xf32, #tpu.memory_space<vmem>>, %arg11: memref<8x1xf32, #tpu.memory_space<vmem>>, %arg12: memref<9x8x1xf32, #tpu.memory_space<vmem>>, %arg13: memref<1xf32, #tpu.memory_space<smem>>, %arg14: memref<1x1x256xf32, #tpu.memory_space<vmem>>) attributes {dimension_semantics = [#tpu.dimension_semantics<parallel>], iteration_bounds = array<i64: 2>, scalar_prefetch = 0 : i64, scratch_operands = 0 : i64, tpu.core_type = #tpu.core_type<tc>, window_params = [{transform_indices = @transform_0, window_bounds = array<i64: 1, 3, 256>}, {transform_indices = @transform_1, window_bounds = array<i64: 1, 6, 256>}, {transform_indices = @transform_2, window_bounds = array<i64: 1, 3, 256>}, {transform_indices = @transform_3, window_bounds = array<i64: 1, 6, 256>}, {pipeline_mode = #tpu.pipeline_mode<synchronous>, transform_indices = @transform_4, window_bounds = array<i64: 16, 3>}, {pipeline_mode = #tpu.pipeline_mode<synchronous>, transform_indices = @transform_5, window_bounds = array<i64: 16, 6>}, {pipeline_mode = #tpu.pipeline_mode<synchronous>, transform_indices = @transform_6, window_bounds = array<i64: 16, 3>}, {pipeline_mode = #tpu.pipeline_mode<synchronous>, transform_indices = @transform_7, window_bounds = array<i64: 16, 6>}, {pipeline_mode = #tpu.pipeline_mode<synchronous>, transform_indices = @transform_8, window_bounds = array<i64: 16, 1>}, {pipeline_mode = #tpu.pipeline_mode<synchronous>, transform_indices = @transform_9, window_bounds = array<i64: 9, 8, 16>}, {pipeline_mode = #tpu.pipeline_mode<synchronous>, transform_indices = @transform_10, window_bounds = array<i64: 8, 1>}, {pipeline_mode = #tpu.pipeline_mode<synchronous>, transform_indices = @transform_11, window_bounds = array<i64: 9, 8, 1>}, {transform_indices = @transform_12, window_bounds = array<i64: 1>}, {transform_indices = @transform_13, window_bounds = array<i64: 1, 1, 256>}]} {
    %c0 = arith.constant 0 : index
    %c0_0 = arith.constant 0 : index
    %0 = vector.load %arg5[%c0, %c0_0] : memref<16x3xf32, #tpu.memory_space<vmem>>, vector<16x3xf32>
    %c0_1 = arith.constant 0 : index
    %c0_2 = arith.constant 0 : index
    %c0_3 = arith.constant 0 : index
    %1 = vector.load %arg1[%c0_1, %c0_2, %c0_3] : memref<1x3x256xf32, #tpu.memory_space<vmem>>, vector<1x3x256xf32>
    %2 = vector.shape_cast %1 : vector<1x3x256xf32> to vector<3x256xf32>
    %cst = arith.constant dense<0.000000e+00> : vector<16x256xf32>
    %3 = tpu.matmul %0, %2, %cst {dimension_numbers = #tpu.dot_dimension_numbers<[1], [0], [0], [1], [0, 0, 1, 1], [], []>} : vector<16x3xf32>, vector<3x256xf32>, vector<16x256xf32> -> vector<16x256xf32>
    %c0_4 = arith.constant 0 : index
    %c0_5 = arith.constant 0 : index
    %4 = vector.load %arg6[%c0_4, %c0_5] : memref<16x6xf32, #tpu.memory_space<vmem>>, vector<16x6xf32>
    %c0_6 = arith.constant 0 : index
    %c0_7 = arith.constant 0 : index
    %c0_8 = arith.constant 0 : index
    %5 = vector.load %arg2[%c0_6, %c0_7, %c0_8] : memref<1x6x256xf32, #tpu.memory_space<vmem>>, vector<1x6x256xf32>
    %6 = vector.shape_cast %5 : vector<1x6x256xf32> to vector<6x256xf32>
    %cst_9 = arith.constant dense<0.000000e+00> : vector<16x256xf32>
    %7 = tpu.matmul %4, %6, %cst_9 {dimension_numbers = #tpu.dot_dimension_numbers<[1], [0], [0], [1], [0, 0, 1, 1], [], []>} : vector<16x6xf32>, vector<6x256xf32>, vector<16x256xf32> -> vector<16x256xf32>
    %8 = arith.addf %3, %7 : vector<16x256xf32>
    %c0_10 = arith.constant 0 : index
    %c0_11 = arith.constant 0 : index
    %9 = vector.load %arg7[%c0_10, %c0_11] : memref<16x3xf32, #tpu.memory_space<vmem>>, vector<16x3xf32>
    %c0_12 = arith.constant 0 : index
    %c0_13 = arith.constant 0 : index
    %c0_14 = arith.constant 0 : index
    %10 = vector.load %arg3[%c0_12, %c0_13, %c0_14] : memref<1x3x256xf32, #tpu.memory_space<vmem>>, vector<1x3x256xf32>
    %11 = vector.shape_cast %10 : vector<1x3x256xf32> to vector<3x256xf32>
    %cst_15 = arith.constant dense<0.000000e+00> : vector<16x256xf32>
    %12 = tpu.matmul %9, %11, %cst_15 {dimension_numbers = #tpu.dot_dimension_numbers<[1], [0], [0], [1], [0, 0, 1, 1], [], []>} : vector<16x3xf32>, vector<3x256xf32>, vector<16x256xf32> -> vector<16x256xf32>
    %13 = arith.addf %8, %12 : vector<16x256xf32>
    %c0_16 = arith.constant 0 : index
    %c0_17 = arith.constant 0 : index
    %14 = vector.load %arg8[%c0_16, %c0_17] : memref<16x6xf32, #tpu.memory_space<vmem>>, vector<16x6xf32>
    %c0_18 = arith.constant 0 : index
    %c0_19 = arith.constant 0 : index
    %c0_20 = arith.constant 0 : index
    %15 = vector.load %arg4[%c0_18, %c0_19, %c0_20] : memref<1x6x256xf32, #tpu.memory_space<vmem>>, vector<1x6x256xf32>
    %16 = vector.shape_cast %15 : vector<1x6x256xf32> to vector<6x256xf32>
    %cst_21 = arith.constant dense<0.000000e+00> : vector<16x256xf32>
    %17 = tpu.matmul %14, %16, %cst_21 {dimension_numbers = #tpu.dot_dimension_numbers<[1], [0], [0], [1], [0, 0, 1, 1], [], []>} : vector<16x6xf32>, vector<6x256xf32>, vector<16x256xf32> -> vector<16x256xf32>
    %18 = arith.addf %13, %17 : vector<16x256xf32>
    %c0_22 = arith.constant 0 : index
    %c0_23 = arith.constant 0 : index
    %19 = vector.load %arg9[%c0_22, %c0_23] : memref<16x1xf32, #tpu.memory_space<vmem>>, vector<16x1xf32>
    %20 = vector.broadcast %19 : vector<16x1xf32> to vector<16x256xf32>
    %21 = arith.addf %18, %20 : vector<16x256xf32>
    %cst_24 = arith.constant 0.000000e+00 : f32
    %22 = vector.broadcast %cst_24 : f32 to vector<16x256xf32>
    %23 = arith.maximumf %21, %22 : vector<16x256xf32>
    %24 = tpu.iota {dimensions = array<i32: 1>} : vector<1x256xi32>
    %c16_i32 = arith.constant 16 : i32
    %c0_i32 = arith.constant 0 : i32
    %25 = arith.cmpi eq, %c16_i32, %c0_i32 : i32
    %c1_i32 = arith.constant 1 : i32
    %26 = arith.select %25, %c1_i32, %c16_i32 : i32
    %27 = vector.broadcast %26 : i32 to vector<1x256xi32>
    %28 = arith.remsi %24, %27 : vector<1x256xi32>
    %c0_i32_25 = arith.constant 0 : i32
    %29 = vector.broadcast %c0_i32_25 : i32 to vector<1x256xi32>
    %30 = arith.cmpi ne, %28, %29 : vector<1x256xi32>
    %c0_i32_26 = arith.constant 0 : i32
    %31 = vector.broadcast %c0_i32_26 : i32 to vector<1x256xi32>
    %32 = arith.cmpi slt, %28, %31 : vector<1x256xi32>
    %c0_i32_27 = arith.constant 0 : i32
    %33 = arith.cmpi slt, %26, %c0_i32_27 : i32
    %34 = vector.broadcast %33 : i1 to vector<1x256xi1>
    %35 = vector.broadcast %34 : vector<1x256xi1> to vector<1x256xi1>
    %36 = arith.xori %32, %35 : vector<1x256xi1>
    %37 = arith.andi %36, %30 : vector<1x256xi1>
    %38 = vector.broadcast %26 : i32 to vector<1x256xi32>
    %39 = arith.addi %28, %38 : vector<1x256xi32>
    %40 = arith.select %37, %39, %28 : vector<1x256xi1>, vector<1x256xi32>
    %c1_i32_28 = arith.constant 1 : i32
    %41 = vector.broadcast %c1_i32_28 : i32 to vector<1x256xi32>
    %42 = arith.cmpi sge, %40, %41 : vector<1x256xi32>
    %c16_i32_29 = arith.constant 16 : i32
    %43 = vector.broadcast %c16_i32_29 : i32 to vector<1x256xi32>
    %44 = arith.cmpi sge, %24, %43 : vector<1x256xi32>
    %45 = arith.andi %42, %44 : vector<1x256xi1>
    %46 = arith.extui %45 : vector<1x256xi1> to vector<1x256xi32>
    %47 = arith.sitofp %46 : vector<1x256xi32> to vector<1x256xf32>
    %c16_i32_30 = arith.constant 16 : i32
    %48 = vector.broadcast %c16_i32_30 : i32 to vector<1x256xi32>
    %49 = arith.cmpi sge, %24, %48 : vector<1x256xi32>
    %50 = arith.extui %49 : vector<1x256xi1> to vector<1x256xi32>
    %51 = arith.sitofp %50 : vector<1x256xi32> to vector<1x256xf32>
    %c15_i32 = arith.constant 15 : i32
    %52 = vector.broadcast %c15_i32 : i32 to vector<1x256xi32>
    %53 = arith.cmpi slt, %40, %52 : vector<1x256xi32>
    %c16_i32_31 = arith.constant 16 : i32
    %54 = vector.broadcast %c16_i32_31 : i32 to vector<1x256xi32>
    %55 = arith.cmpi sge, %24, %54 : vector<1x256xi32>
    %56 = arith.andi %53, %55 : vector<1x256xi1>
    %57 = arith.extui %56 : vector<1x256xi1> to vector<1x256xi32>
    %58 = arith.sitofp %57 : vector<1x256xi32> to vector<1x256xf32>
    %c1_i32_32 = arith.constant 1 : i32
    %59 = vector.broadcast %c1_i32_32 : i32 to vector<1x256xi32>
    %60 = arith.cmpi sge, %40, %59 : vector<1x256xi32>
    %61 = arith.extui %60 : vector<1x256xi1> to vector<1x256xi32>
    %62 = arith.sitofp %61 : vector<1x256xi32> to vector<1x256xf32>
    %c15_i32_33 = arith.constant 15 : i32
    %63 = vector.broadcast %c15_i32_33 : i32 to vector<1x256xi32>
    %64 = arith.cmpi slt, %40, %63 : vector<1x256xi32>
    %65 = arith.extui %64 : vector<1x256xi1> to vector<1x256xi32>
    %66 = arith.sitofp %65 : vector<1x256xi32> to vector<1x256xf32>
    %c1_i32_34 = arith.constant 1 : i32
    %67 = vector.broadcast %c1_i32_34 : i32 to vector<1x256xi32>
    %68 = arith.cmpi sge, %40, %67 : vector<1x256xi32>
    %c240_i32 = arith.constant 240 : i32
    %69 = vector.broadcast %c240_i32 : i32 to vector<1x256xi32>
    %70 = arith.cmpi slt, %24, %69 : vector<1x256xi32>
    %71 = arith.andi %68, %70 : vector<1x256xi1>
    %72 = arith.extui %71 : vector<1x256xi1> to vector<1x256xi32>
    %73 = arith.sitofp %72 : vector<1x256xi32> to vector<1x256xf32>
    %c240_i32_35 = arith.constant 240 : i32
    %74 = vector.broadcast %c240_i32_35 : i32 to vector<1x256xi32>
    %75 = arith.cmpi slt, %24, %74 : vector<1x256xi32>
    %76 = arith.extui %75 : vector<1x256xi1> to vector<1x256xi32>
    %77 = arith.sitofp %76 : vector<1x256xi32> to vector<1x256xf32>
    %c15_i32_36 = arith.constant 15 : i32
    %78 = vector.broadcast %c15_i32_36 : i32 to vector<1x256xi32>
    %79 = arith.cmpi slt, %40, %78 : vector<1x256xi32>
    %c240_i32_37 = arith.constant 240 : i32
    %80 = vector.broadcast %c240_i32_37 : i32 to vector<1x256xi32>
    %81 = arith.cmpi slt, %24, %80 : vector<1x256xi32>
    %82 = arith.andi %79, %81 : vector<1x256xi1>
    %83 = arith.extui %82 : vector<1x256xi1> to vector<1x256xi32>
    %84 = arith.sitofp %83 : vector<1x256xi32> to vector<1x256xf32>
    %cst_38 = arith.constant 0.000000e+00 : f32
    %85 = vector.broadcast %cst_38 : f32 to vector<8x256xf32>
    %c0_39 = arith.constant 0 : index
    %c0_40 = arith.constant 0 : index
    %c0_41 = arith.constant 0 : index
    %86 = vector.load %arg10[%c0_39, %c0_40, %c0_41] : memref<9x8x16xf32, #tpu.memory_space<vmem>>, vector<1x8x16xf32>
    %87 = vector.shape_cast %86 : vector<1x8x16xf32> to vector<8x16xf32>
    %c17_i32 = arith.constant 17 : i32
    %88 = tpu.dynamic_rotate %23 by %c17_i32 dim 1 : vector<16x256xf32>, i32 -> vector<16x256xf32>
    %89 = vector.broadcast %47 : vector<1x256xf32> to vector<16x256xf32>
    %90 = arith.mulf %88, %89 : vector<16x256xf32>
    %cst_42 = arith.constant dense<0.000000e+00> : vector<8x256xf32>
    %91 = tpu.matmul %87, %90, %cst_42 {dimension_numbers = #tpu.dot_dimension_numbers<[1], [0], [0], [1], [0, 0, 1, 1], [], []>} : vector<8x16xf32>, vector<16x256xf32>, vector<8x256xf32> -> vector<8x256xf32>
    %92 = arith.addf %85, %91 : vector<8x256xf32>
    %c1 = arith.constant 1 : index
    %c0_43 = arith.constant 0 : index
    %c0_44 = arith.constant 0 : index
    %93 = vector.load %arg10[%c1, %c0_43, %c0_44] : memref<9x8x16xf32, #tpu.memory_space<vmem>>, vector<1x8x16xf32>
    %94 = vector.shape_cast %93 : vector<1x8x16xf32> to vector<8x16xf32>
    %c16_i32_45 = arith.constant 16 : i32
    %95 = tpu.dynamic_rotate %23 by %c16_i32_45 dim 1 : vector<16x256xf32>, i32 -> vector<16x256xf32>
    %96 = vector.broadcast %51 : vector<1x256xf32> to vector<16x256xf32>
    %97 = arith.mulf %95, %96 : vector<16x256xf32>
    %cst_46 = arith.constant dense<0.000000e+00> : vector<8x256xf32>
    %98 = tpu.matmul %94, %97, %cst_46 {dimension_numbers = #tpu.dot_dimension_numbers<[1], [0], [0], [1], [0, 0, 1, 1], [], []>} : vector<8x16xf32>, vector<16x256xf32>, vector<8x256xf32> -> vector<8x256xf32>
    %99 = arith.addf %92, %98 : vector<8x256xf32>
    %c2 = arith.constant 2 : index
    %c0_47 = arith.constant 0 : index
    %c0_48 = arith.constant 0 : index
    %100 = vector.load %arg10[%c2, %c0_47, %c0_48] : memref<9x8x16xf32, #tpu.memory_space<vmem>>, vector<1x8x16xf32>
    %101 = vector.shape_cast %100 : vector<1x8x16xf32> to vector<8x16xf32>
    %c15_i32_49 = arith.constant 15 : i32
    %102 = tpu.dynamic_rotate %23 by %c15_i32_49 dim 1 : vector<16x256xf32>, i32 -> vector<16x256xf32>
    %103 = vector.broadcast %58 : vector<1x256xf32> to vector<16x256xf32>
    %104 = arith.mulf %102, %103 : vector<16x256xf32>
    %cst_50 = arith.constant dense<0.000000e+00> : vector<8x256xf32>
    %105 = tpu.matmul %101, %104, %cst_50 {dimension_numbers = #tpu.dot_dimension_numbers<[1], [0], [0], [1], [0, 0, 1, 1], [], []>} : vector<8x16xf32>, vector<16x256xf32>, vector<8x256xf32> -> vector<8x256xf32>
    %106 = arith.addf %99, %105 : vector<8x256xf32>
    %c3 = arith.constant 3 : index
    %c0_51 = arith.constant 0 : index
    %c0_52 = arith.constant 0 : index
    %107 = vector.load %arg10[%c3, %c0_51, %c0_52] : memref<9x8x16xf32, #tpu.memory_space<vmem>>, vector<1x8x16xf32>
    %108 = vector.shape_cast %107 : vector<1x8x16xf32> to vector<8x16xf32>
    %c1_i32_53 = arith.constant 1 : i32
    %109 = tpu.dynamic_rotate %23 by %c1_i32_53 dim 1 : vector<16x256xf32>, i32 -> vector<16x256xf32>
    %110 = vector.broadcast %62 : vector<1x256xf32> to vector<16x256xf32>
    %111 = arith.mulf %109, %110 : vector<16x256xf32>
    %cst_54 = arith.constant dense<0.000000e+00> : vector<8x256xf32>
    %112 = tpu.matmul %108, %111, %cst_54 {dimension_numbers = #tpu.dot_dimension_numbers<[1], [0], [0], [1], [0, 0, 1, 1], [], []>} : vector<8x16xf32>, vector<16x256xf32>, vector<8x256xf32> -> vector<8x256xf32>
    %113 = arith.addf %106, %112 : vector<8x256xf32>
    %c4 = arith.constant 4 : index
    %c0_55 = arith.constant 0 : index
    %c0_56 = arith.constant 0 : index
    %114 = vector.load %arg10[%c4, %c0_55, %c0_56] : memref<9x8x16xf32, #tpu.memory_space<vmem>>, vector<1x8x16xf32>
    %115 = vector.shape_cast %114 : vector<1x8x16xf32> to vector<8x16xf32>
    %cst_57 = arith.constant dense<0.000000e+00> : vector<8x256xf32>
    %116 = tpu.matmul %115, %23, %cst_57 {dimension_numbers = #tpu.dot_dimension_numbers<[1], [0], [0], [1], [0, 0, 1, 1], [], []>} : vector<8x16xf32>, vector<16x256xf32>, vector<8x256xf32> -> vector<8x256xf32>
    %117 = arith.addf %113, %116 : vector<8x256xf32>
    %c5 = arith.constant 5 : index
    %c0_58 = arith.constant 0 : index
    %c0_59 = arith.constant 0 : index
    %118 = vector.load %arg10[%c5, %c0_58, %c0_59] : memref<9x8x16xf32, #tpu.memory_space<vmem>>, vector<1x8x16xf32>
    %119 = vector.shape_cast %118 : vector<1x8x16xf32> to vector<8x16xf32>
    %c255_i32 = arith.constant 255 : i32
    %120 = tpu.dynamic_rotate %23 by %c255_i32 dim 1 : vector<16x256xf32>, i32 -> vector<16x256xf32>
    %121 = vector.broadcast %66 : vector<1x256xf32> to vector<16x256xf32>
    %122 = arith.mulf %120, %121 : vector<16x256xf32>
    %cst_60 = arith.constant dense<0.000000e+00> : vector<8x256xf32>
    %123 = tpu.matmul %119, %122, %cst_60 {dimension_numbers = #tpu.dot_dimension_numbers<[1], [0], [0], [1], [0, 0, 1, 1], [], []>} : vector<8x16xf32>, vector<16x256xf32>, vector<8x256xf32> -> vector<8x256xf32>
    %124 = arith.addf %117, %123 : vector<8x256xf32>
    %c6 = arith.constant 6 : index
    %c0_61 = arith.constant 0 : index
    %c0_62 = arith.constant 0 : index
    %125 = vector.load %arg10[%c6, %c0_61, %c0_62] : memref<9x8x16xf32, #tpu.memory_space<vmem>>, vector<1x8x16xf32>
    %126 = vector.shape_cast %125 : vector<1x8x16xf32> to vector<8x16xf32>
    %c241_i32 = arith.constant 241 : i32
    %127 = tpu.dynamic_rotate %23 by %c241_i32 dim 1 : vector<16x256xf32>, i32 -> vector<16x256xf32>
    %128 = vector.broadcast %73 : vector<1x256xf32> to vector<16x256xf32>
    %129 = arith.mulf %127, %128 : vector<16x256xf32>
    %cst_63 = arith.constant dense<0.000000e+00> : vector<8x256xf32>
    %130 = tpu.matmul %126, %129, %cst_63 {dimension_numbers = #tpu.dot_dimension_numbers<[1], [0], [0], [1], [0, 0, 1, 1], [], []>} : vector<8x16xf32>, vector<16x256xf32>, vector<8x256xf32> -> vector<8x256xf32>
    %131 = arith.addf %124, %130 : vector<8x256xf32>
    %c7 = arith.constant 7 : index
    %c0_64 = arith.constant 0 : index
    %c0_65 = arith.constant 0 : index
    %132 = vector.load %arg10[%c7, %c0_64, %c0_65] : memref<9x8x16xf32, #tpu.memory_space<vmem>>, vector<1x8x16xf32>
    %133 = vector.shape_cast %132 : vector<1x8x16xf32> to vector<8x16xf32>
    %c240_i32_66 = arith.constant 240 : i32
    %134 = tpu.dynamic_rotate %23 by %c240_i32_66 dim 1 : vector<16x256xf32>, i32 -> vector<16x256xf32>
    %135 = vector.broadcast %77 : vector<1x256xf32> to vector<16x256xf32>
    %136 = arith.mulf %134, %135 : vector<16x256xf32>
    %cst_67 = arith.constant dense<0.000000e+00> : vector<8x256xf32>
    %137 = tpu.matmul %133, %136, %cst_67 {dimension_numbers = #tpu.dot_dimension_numbers<[1], [0], [0], [1], [0, 0, 1, 1], [], []>} : vector<8x16xf32>, vector<16x256xf32>, vector<8x256xf32> -> vector<8x256xf32>
    %138 = arith.addf %131, %137 : vector<8x256xf32>
    %c8 = arith.constant 8 : index
    %c0_68 = arith.constant 0 : index
    %c0_69 = arith.constant 0 : index
    %139 = vector.load %arg10[%c8, %c0_68, %c0_69] : memref<9x8x16xf32, #tpu.memory_space<vmem>>, vector<1x8x16xf32>
    %140 = vector.shape_cast %139 : vector<1x8x16xf32> to vector<8x16xf32>
    %c239_i32 = arith.constant 239 : i32
    %141 = tpu.dynamic_rotate %23 by %c239_i32 dim 1 : vector<16x256xf32>, i32 -> vector<16x256xf32>
    %142 = vector.broadcast %84 : vector<1x256xf32> to vector<16x256xf32>
    %143 = arith.mulf %141, %142 : vector<16x256xf32>
    %cst_70 = arith.constant dense<0.000000e+00> : vector<8x256xf32>
    %144 = tpu.matmul %140, %143, %cst_70 {dimension_numbers = #tpu.dot_dimension_numbers<[1], [0], [0], [1], [0, 0, 1, 1], [], []>} : vector<8x16xf32>, vector<16x256xf32>, vector<8x256xf32> -> vector<8x256xf32>
    %145 = arith.addf %138, %144 : vector<8x256xf32>
    %c0_71 = arith.constant 0 : index
    %c0_72 = arith.constant 0 : index
    %146 = vector.load %arg11[%c0_71, %c0_72] : memref<8x1xf32, #tpu.memory_space<vmem>>, vector<8x1xf32>
    %147 = vector.broadcast %146 : vector<8x1xf32> to vector<8x256xf32>
    %148 = arith.addf %145, %147 : vector<8x256xf32>
    %cst_73 = arith.constant 0.000000e+00 : f32
    %149 = vector.broadcast %cst_73 : f32 to vector<8x256xf32>
    %150 = arith.maximumf %148, %149 : vector<8x256xf32>
    %cst_74 = arith.constant 0.000000e+00 : f32
    %151 = vector.broadcast %cst_74 : f32 to vector<8x256xf32>
    %c0_75 = arith.constant 0 : index
    %c0_76 = arith.constant 0 : index
    %c0_77 = arith.constant 0 : index
    %152 = vector.load %arg12[%c0_75, %c0_76, %c0_77] : memref<9x8x1xf32, #tpu.memory_space<vmem>>, vector<1x8x1xf32>
    %153 = vector.shape_cast %152 : vector<1x8x1xf32> to vector<8x1xf32>
    %c17_i32_78 = arith.constant 17 : i32
    %154 = tpu.dynamic_rotate %150 by %c17_i32_78 dim 1 : vector<8x256xf32>, i32 -> vector<8x256xf32>
    %155 = vector.broadcast %47 : vector<1x256xf32> to vector<8x256xf32>
    %156 = arith.mulf %154, %155 : vector<8x256xf32>
    %157 = vector.broadcast %153 : vector<8x1xf32> to vector<8x256xf32>
    %158 = arith.mulf %157, %156 : vector<8x256xf32>
    %159 = arith.addf %151, %158 : vector<8x256xf32>
    %c1_79 = arith.constant 1 : index
    %c0_80 = arith.constant 0 : index
    %c0_81 = arith.constant 0 : index
    %160 = vector.load %arg12[%c1_79, %c0_80, %c0_81] : memref<9x8x1xf32, #tpu.memory_space<vmem>>, vector<1x8x1xf32>
    %161 = vector.shape_cast %160 : vector<1x8x1xf32> to vector<8x1xf32>
    %c16_i32_82 = arith.constant 16 : i32
    %162 = tpu.dynamic_rotate %150 by %c16_i32_82 dim 1 : vector<8x256xf32>, i32 -> vector<8x256xf32>
    %163 = vector.broadcast %51 : vector<1x256xf32> to vector<8x256xf32>
    %164 = arith.mulf %162, %163 : vector<8x256xf32>
    %165 = vector.broadcast %161 : vector<8x1xf32> to vector<8x256xf32>
    %166 = arith.mulf %165, %164 : vector<8x256xf32>
    %167 = arith.addf %159, %166 : vector<8x256xf32>
    %c2_83 = arith.constant 2 : index
    %c0_84 = arith.constant 0 : index
    %c0_85 = arith.constant 0 : index
    %168 = vector.load %arg12[%c2_83, %c0_84, %c0_85] : memref<9x8x1xf32, #tpu.memory_space<vmem>>, vector<1x8x1xf32>
    %169 = vector.shape_cast %168 : vector<1x8x1xf32> to vector<8x1xf32>
    %c15_i32_86 = arith.constant 15 : i32
    %170 = tpu.dynamic_rotate %150 by %c15_i32_86 dim 1 : vector<8x256xf32>, i32 -> vector<8x256xf32>
    %171 = vector.broadcast %58 : vector<1x256xf32> to vector<8x256xf32>
    %172 = arith.mulf %170, %171 : vector<8x256xf32>
    %173 = vector.broadcast %169 : vector<8x1xf32> to vector<8x256xf32>
    %174 = arith.mulf %173, %172 : vector<8x256xf32>
    %175 = arith.addf %167, %174 : vector<8x256xf32>
    %c3_87 = arith.constant 3 : index
    %c0_88 = arith.constant 0 : index
    %c0_89 = arith.constant 0 : index
    %176 = vector.load %arg12[%c3_87, %c0_88, %c0_89] : memref<9x8x1xf32, #tpu.memory_space<vmem>>, vector<1x8x1xf32>
    %177 = vector.shape_cast %176 : vector<1x8x1xf32> to vector<8x1xf32>
    %c1_i32_90 = arith.constant 1 : i32
    %178 = tpu.dynamic_rotate %150 by %c1_i32_90 dim 1 : vector<8x256xf32>, i32 -> vector<8x256xf32>
    %179 = vector.broadcast %62 : vector<1x256xf32> to vector<8x256xf32>
    %180 = arith.mulf %178, %179 : vector<8x256xf32>
    %181 = vector.broadcast %177 : vector<8x1xf32> to vector<8x256xf32>
    %182 = arith.mulf %181, %180 : vector<8x256xf32>
    %183 = arith.addf %175, %182 : vector<8x256xf32>
    %c4_91 = arith.constant 4 : index
    %c0_92 = arith.constant 0 : index
    %c0_93 = arith.constant 0 : index
    %184 = vector.load %arg12[%c4_91, %c0_92, %c0_93] : memref<9x8x1xf32, #tpu.memory_space<vmem>>, vector<1x8x1xf32>
    %185 = vector.shape_cast %184 : vector<1x8x1xf32> to vector<8x1xf32>
    %186 = vector.broadcast %185 : vector<8x1xf32> to vector<8x256xf32>
    %187 = arith.mulf %186, %150 : vector<8x256xf32>
    %188 = arith.addf %183, %187 : vector<8x256xf32>
    %c5_94 = arith.constant 5 : index
    %c0_95 = arith.constant 0 : index
    %c0_96 = arith.constant 0 : index
    %189 = vector.load %arg12[%c5_94, %c0_95, %c0_96] : memref<9x8x1xf32, #tpu.memory_space<vmem>>, vector<1x8x1xf32>
    %190 = vector.shape_cast %189 : vector<1x8x1xf32> to vector<8x1xf32>
    %c255_i32_97 = arith.constant 255 : i32
    %191 = tpu.dynamic_rotate %150 by %c255_i32_97 dim 1 : vector<8x256xf32>, i32 -> vector<8x256xf32>
    %192 = vector.broadcast %66 : vector<1x256xf32> to vector<8x256xf32>
    %193 = arith.mulf %191, %192 : vector<8x256xf32>
    %194 = vector.broadcast %190 : vector<8x1xf32> to vector<8x256xf32>
    %195 = arith.mulf %194, %193 : vector<8x256xf32>
    %196 = arith.addf %188, %195 : vector<8x256xf32>
    %c6_98 = arith.constant 6 : index
    %c0_99 = arith.constant 0 : index
    %c0_100 = arith.constant 0 : index
    %197 = vector.load %arg12[%c6_98, %c0_99, %c0_100] : memref<9x8x1xf32, #tpu.memory_space<vmem>>, vector<1x8x1xf32>
    %198 = vector.shape_cast %197 : vector<1x8x1xf32> to vector<8x1xf32>
    %c241_i32_101 = arith.constant 241 : i32
    %199 = tpu.dynamic_rotate %150 by %c241_i32_101 dim 1 : vector<8x256xf32>, i32 -> vector<8x256xf32>
    %200 = vector.broadcast %73 : vector<1x256xf32> to vector<8x256xf32>
    %201 = arith.mulf %199, %200 : vector<8x256xf32>
    %202 = vector.broadcast %198 : vector<8x1xf32> to vector<8x256xf32>
    %203 = arith.mulf %202, %201 : vector<8x256xf32>
    %204 = arith.addf %196, %203 : vector<8x256xf32>
    %c7_102 = arith.constant 7 : index
    %c0_103 = arith.constant 0 : index
    %c0_104 = arith.constant 0 : index
    %205 = vector.load %arg12[%c7_102, %c0_103, %c0_104] : memref<9x8x1xf32, #tpu.memory_space<vmem>>, vector<1x8x1xf32>
    %206 = vector.shape_cast %205 : vector<1x8x1xf32> to vector<8x1xf32>
    %c240_i32_105 = arith.constant 240 : i32
    %207 = tpu.dynamic_rotate %150 by %c240_i32_105 dim 1 : vector<8x256xf32>, i32 -> vector<8x256xf32>
    %208 = vector.broadcast %77 : vector<1x256xf32> to vector<8x256xf32>
    %209 = arith.mulf %207, %208 : vector<8x256xf32>
    %210 = vector.broadcast %206 : vector<8x1xf32> to vector<8x256xf32>
    %211 = arith.mulf %210, %209 : vector<8x256xf32>
    %212 = arith.addf %204, %211 : vector<8x256xf32>
    %c8_106 = arith.constant 8 : index
    %c0_107 = arith.constant 0 : index
    %c0_108 = arith.constant 0 : index
    %213 = vector.load %arg12[%c8_106, %c0_107, %c0_108] : memref<9x8x1xf32, #tpu.memory_space<vmem>>, vector<1x8x1xf32>
    %214 = vector.shape_cast %213 : vector<1x8x1xf32> to vector<8x1xf32>
    %c239_i32_109 = arith.constant 239 : i32
    %215 = tpu.dynamic_rotate %150 by %c239_i32_109 dim 1 : vector<8x256xf32>, i32 -> vector<8x256xf32>
    %216 = vector.broadcast %84 : vector<1x256xf32> to vector<8x256xf32>
    %217 = arith.mulf %215, %216 : vector<8x256xf32>
    %218 = vector.broadcast %214 : vector<8x1xf32> to vector<8x256xf32>
    %219 = arith.mulf %218, %217 : vector<8x256xf32>
    %220 = arith.addf %212, %219 : vector<8x256xf32>
    %cst_110 = arith.constant dense<0.000000e+00> : vector<256xf32>
    %221 = vector.multi_reduction <add>, %220, %cst_110 [0] : vector<8x256xf32> to vector<256xf32>
    %222 = vector.shape_cast %221 : vector<256xf32> to vector<1x256xf32>
    %c0_111 = arith.constant 0 : index
    %223 = memref.load %arg13[%c0_111] : memref<1xf32, #tpu.memory_space<smem>>
    %224 = vector.broadcast %223 : f32 to vector<1x256xf32>
    %225 = arith.addf %222, %224 : vector<1x256xf32>
    %cst_112 = arith.constant -1.000000e+00 : f32
    %cst_113 = arith.constant 1.000000e+00 : f32
    %226 = vector.broadcast %cst_112 : f32 to vector<1x256xf32>
    %227 = arith.maximumf %226, %225 : vector<1x256xf32>
    %228 = vector.broadcast %cst_113 : f32 to vector<1x256xf32>
    %229 = arith.minimumf %228, %227 : vector<1x256xf32>
    %c0_114 = arith.constant 0 : index
    %c0_115 = arith.constant 0 : index
    %c0_116 = arith.constant 0 : index
    %230 = vector.load %arg14[%c0_114, %c0_115, %c0_116] : memref<1x1x256xf32, #tpu.memory_space<vmem>>, vector<1x1x256xf32>
    %231 = vector.shape_cast %230 : vector<1x1x256xf32> to vector<1x256xf32>
    %232 = vector.shape_cast %229 : vector<1x256xf32> to vector<1x1x256xf32>
    tpu.vector_store %arg14[%c0_114, %c0_115, %c0_116], %232 {strides = array<i32>} : memref<1x1x256xf32, #tpu.memory_space<vmem>>, vector<1x1x256xf32>,
    return
  }
  func.func @transform_0(%arg0: i32) -> (i32, i32, i32) {
    %c0_i32 = arith.constant 0 : i32
    %c0_i32_0 = arith.constant 0 : i32
    %c0_i32_1 = arith.constant 0 : i32
    return %arg0, %c0_i32, %c0_i32_0 : i32, i32, i32
  }
  func.func @transform_1(%arg0: i32) -> (i32, i32, i32) {
    %c0_i32 = arith.constant 0 : i32
    %c0_i32_0 = arith.constant 0 : i32
    %c0_i32_1 = arith.constant 0 : i32
    return %arg0, %c0_i32, %c0_i32_0 : i32, i32, i32
  }
  func.func @transform_2(%arg0: i32) -> (i32, i32, i32) {
    %c0_i32 = arith.constant 0 : i32
    %c0_i32_0 = arith.constant 0 : i32
    %c0_i32_1 = arith.constant 0 : i32
    return %arg0, %c0_i32, %c0_i32_0 : i32, i32, i32
  }
  func.func @transform_3(%arg0: i32) -> (i32, i32, i32) {
    %c0_i32 = arith.constant 0 : i32
    %c0_i32_0 = arith.constant 0 : i32
    %c0_i32_1 = arith.constant 0 : i32
    return %arg0, %c0_i32, %c0_i32_0 : i32, i32, i32
  }
  func.func @transform_4(%arg0: i32) -> (i32, i32) {
    %c0_i32 = arith.constant 0 : i32
    %c0_i32_0 = arith.constant 0 : i32
    %c0_i32_1 = arith.constant 0 : i32
    return %c0_i32, %c0_i32_0 : i32, i32
  }
  func.func @transform_5(%arg0: i32) -> (i32, i32) {
    %c0_i32 = arith.constant 0 : i32
    %c0_i32_0 = arith.constant 0 : i32
    %c0_i32_1 = arith.constant 0 : i32
    return %c0_i32, %c0_i32_0 : i32, i32
  }
  func.func @transform_6(%arg0: i32) -> (i32, i32) {
    %c0_i32 = arith.constant 0 : i32
    %c0_i32_0 = arith.constant 0 : i32
    %c0_i32_1 = arith.constant 0 : i32
    return %c0_i32, %c0_i32_0 : i32, i32
  }
  func.func @transform_7(%arg0: i32) -> (i32, i32) {
    %c0_i32 = arith.constant 0 : i32
    %c0_i32_0 = arith.constant 0 : i32
    %c0_i32_1 = arith.constant 0 : i32
    return %c0_i32, %c0_i32_0 : i32, i32
  }
  func.func @transform_8(%arg0: i32) -> (i32, i32) {
    %c0_i32 = arith.constant 0 : i32
    %c0_i32_0 = arith.constant 0 : i32
    %c0_i32_1 = arith.constant 0 : i32
    return %c0_i32, %c0_i32_0 : i32, i32
  }
  func.func @transform_9(%arg0: i32) -> (i32, i32, i32) {
    %c0_i32 = arith.constant 0 : i32
    %c0_i32_0 = arith.constant 0 : i32
    %c0_i32_1 = arith.constant 0 : i32
    %c0_i32_2 = arith.constant 0 : i32
    return %c0_i32, %c0_i32_0, %c0_i32_1 : i32, i32, i32
  }
  func.func @transform_10(%arg0: i32) -> (i32, i32) {
    %c0_i32 = arith.constant 0 : i32
    %c0_i32_0 = arith.constant 0 : i32
    %c0_i32_1 = arith.constant 0 : i32
    return %c0_i32, %c0_i32_0 : i32, i32
  }
  func.func @transform_11(%arg0: i32) -> (i32, i32, i32) {
    %c0_i32 = arith.constant 0 : i32
    %c0_i32_0 = arith.constant 0 : i32
    %c0_i32_1 = arith.constant 0 : i32
    %c0_i32_2 = arith.constant 0 : i32
    return %c0_i32, %c0_i32_0, %c0_i32_1 : i32, i32, i32
  }
  func.func @transform_12(%arg0: i32) -> i32 {
    %c0_i32 = arith.constant 0 : i32
    %c0_i32_0 = arith.constant 0 : i32
    return %c0_i32 : i32
  }
  func.func @transform_13(%arg0: i32) -> (i32, i32, i32) {
    %c0_i32 = arith.constant 0 : i32
    %c0_i32_0 = arith.constant 0 : i32
    %c0_i32_1 = arith.constant 0 : i32
    return %arg0, %c0_i32, %c0_i32_0 : i32, i32, i32
  }
}

</mosaic_0001>

<llo_original>
// kernel: tpu_custom_call.1
$region0: #{tpu_custom_call.1}
  #allocation0 [shape = 'u32[]', space=smem, size = 0x4, offset = 0x4, fixed_abs, tag = 'smem constant byte address 0x4 - core index']
  #allocation1 [shape = 'u32[144,128]{1,0:T(1,128)}', space=vmem, size = 0x12000, scoped, tag = 'internal scratch']
  #allocation2 [shape = 'f32[1]{0:T(128)S(6)}', space=smem, size = 0x200, scoped, tag = 'scoped memory for tpu_custom_call.1']
  %s0 = inlined_call_operand.vmem [shape: f32[2,3,256], index: 0, kind: input, shape index: {}]
  %s1 = inlined_call_operand.vmem [shape: f32[2,6,256], index: 1, kind: input, shape index: {}]
  %s2 = inlined_call_operand.vmem [shape: f32[2,3,256], index: 2, kind: input, shape index: {}]
  %s3 = inlined_call_operand.vmem [shape: f32[2,6,256], index: 3, kind: input, shape index: {}]
  %s4 = inlined_call_operand.vmem [shape: f32[16,3], index: 4, kind: input, shape index: {}]
  %s5 = inlined_call_operand.vmem [shape: f32[16,6], index: 5, kind: input, shape index: {}]
  %s6 = inlined_call_operand.vmem [shape: f32[16,3], index: 6, kind: input, shape index: {}]
  %s7 = inlined_call_operand.vmem [shape: f32[16,6], index: 7, kind: input, shape index: {}]
  %s8 = inlined_call_operand.vmem [shape: f32[16,1], index: 8, kind: input, shape index: {}]
  %s9 = inlined_call_operand.vmem [shape: f32[9,8,16], index: 9, kind: input, shape index: {}]
  %s10 = inlined_call_operand.vmem [shape: f32[8,1], index: 10, kind: input, shape index: {}]
  %s11 = inlined_call_operand.vmem [shape: f32[9,8,1], index: 11, kind: input, shape index: {}]
  %s12 = inlined_call_operand.<no memory space> [shape: f32[1], index: 12, kind: input, shape index: {}]
  %s13 = inlined_call_operand.hbm [shape: f32[2,1,256], index: 13, kind: output, shape index: {}]
  %s14 = sld [smem:[#allocation0]]
  $region85: #{tpu_custom_call.1} parent=0
    _
  %s16 = ssub.s32 1, %s14
  %s17 = scalar_select 0, %s16, %s14
  %18 = sst [smem:[#allocation2]] %s12
  $region1: #{tpu_custom_call.1} parent=0
    #allocation3 [shape = 'u8[2048]{0}', space=vmem, size = 0x800, scoped, tag = 'output window, operand 0']
    #allocation4 [shape = 's32[2]{0}', space=sflag, size = 0x8, scoped, tag = 'scoped memory for tpu_custom_call.1']
    %19 = vsyncpa [#allocation4], 0
    %s20 = scalar_lea.sflag [#allocation4], 1
    %21 = vsyncpa %s20, 0
    loop: start=0, step=1, limit=4
    $region2: #{tpu_custom_call.1} parent=1 // loop_pre_header
      _
    $region3: #{tpu_custom_call.1} parent=1 // loop_header
      %s23 = sphi 0, %s27
      %p24 = scmp.ge.s32.totalorder %s23, 4
      %s33 = sphi 0, %s35
      %s36 = sphi 0, %s33
      %s37 = sphi 0, %s36
      %s53 = sphi 0, %s37
      %s59 = sphi 0, %s61
      %s62 = sphi 0, %s59
      %s63 = sphi 0, %s62
      %s79 = sphi 0, %s63
      %s85 = sphi 0, %s87
      %s88 = sphi 0, %s85
      %s89 = sphi 0, %s88
      %s105 = sphi 0, %s89
      %s111 = sphi 0, %s113
      %s114 = sphi 0, %s111
      %s115 = sphi 0, %s114
      %s131 = sphi 0, %s115
      %s135 = sphi 0, %s135
      %s137 = sphi 0, %s135
      %s138 = sphi 0, %s137
      %s152 = sphi 0, %s138
      %s156 = sphi 0, %s156
      %s158 = sphi 0, %s156
      %s159 = sphi 0, %s158
      %s173 = sphi 0, %s159
      %s177 = sphi 0, %s177
      %s179 = sphi 0, %s177
      %s180 = sphi 0, %s179
      %s194 = sphi 0, %s180
      %s198 = sphi 0, %s198
      %s200 = sphi 0, %s198
      %s201 = sphi 0, %s200
      %s215 = sphi 0, %s201
      %s219 = sphi 0, %s219
      %s221 = sphi 0, %s219
      %s222 = sphi 0, %s221
      %s236 = sphi 0, %s222
      %s240 = sphi 0, %s240
      %s242 = sphi 0, %s240
      %s243 = sphi 0, %s242
      %s257 = sphi 0, %s243
      %s261 = sphi 0, %s261
      %s263 = sphi 0, %s261
      %s264 = sphi 0, %s263
      %s278 = sphi 0, %s264
      %s282 = sphi 0, %s282
      %s284 = sphi 0, %s282
      %s285 = sphi 0, %s284
      %s299 = sphi 0, %s285
      %s303 = sphi 0, %s303
      %s305 = sphi 0, %s303
      %s306 = sphi 0, %s305
      %s320 = sphi 0, %s306
      %s326 = sphi 0, %s328
      %s329 = sphi 0, %s326
      %s330 = sphi 0, %s329
      %s346 = sphi 0, %s330
    $region4: #{tpu_custom_call.1} parent=1 // loop_header_branch
      %26 = sbr.rel (%p24) target = $region8
    $region5: #{tpu_custom_call.1} parent=1 // loop_body
      %s28 = ssub.s32 %s23, 1
      %s29 = ssub.s32 %s23, 2
      %s30 = sadd.s32 %s23, 1
      %s31 = ssub.s32 %s23, %s30
      %p32 = scmp.eq.s32.totalorder %s31, 0
      %s34 = sadd.s32 %s33, 1
      %s35 = scalar_select %p32, %s33, %s34
      %p38 = pneg %p32
      %p39 = scmp.eq.s32.totalorder %s23, 1
      %p40 = por %p38, %p39
      %p41 = scmp.ne.s32.totalorder %s33, %s36
      %p42 = scmp.eq.s32.totalorder %s23, 0
      %p43 = por %p41, %p42
      %p44 = scmp.ne.s32.totalorder %s33, %s36
      %p45 = scmp.eq.s32.totalorder %s28, 1
      %p46 = por %p44, %p45
      %p47 = scmp.ne.s32.totalorder %s36, %s37
      %p48 = scmp.eq.s32.totalorder %s28, 0
      %p49 = por %p47, %p48
      %p50 = scmp.ne.s32.totalorder %s36, %s37
      %p51 = scmp.eq.s32.totalorder %s29, 1
      %p52 = por %p50, %p51
      %p54 = scmp.ne.s32.totalorder %s37, %s53
      %p55 = scmp.eq.s32.totalorder %s29, 0
      %p56 = por %p54, %p55
      %s57 = ssub.s32 %s23, %s30
      %p58 = scmp.eq.s32.totalorder %s57, 0
      %s60 = sadd.s32 %s59, 1
      %s61 = scalar_select %p58, %s59, %s60
      %p64 = pneg %p58
      %p65 = scmp.eq.s32.totalorder %s23, 1
      %p66 = por %p64, %p65
      %p67 = scmp.ne.s32.totalorder %s59, %s62
      %p68 = scmp.eq.s32.totalorder %s23, 0
      %p69 = por %p67, %p68
      %p70 = scmp.ne.s32.totalorder %s59, %s62
      %p71 = scmp.eq.s32.totalorder %s28, 1
      %p72 = por %p70, %p71
      %p73 = scmp.ne.s32.totalorder %s62, %s63
      %p74 = scmp.eq.s32.totalorder %s28, 0
      %p75 = por %p73, %p74
      %p76 = scmp.ne.s32.totalorder %s62, %s63
      %p77 = scmp.eq.s32.totalorder %s29, 1
      %p78 = por %p76, %p77
      %p80 = scmp.ne.s32.totalorder %s63, %s79
      %p81 = scmp.eq.s32.totalorder %s29, 0
      %p82 = por %p80, %p81
      %s83 = ssub.s32 %s23, %s30
      %p84 = scmp.eq.s32.totalorder %s83, 0
      %s86 = sadd.s32 %s85, 1
      %s87 = scalar_select %p84, %s85, %s86
      %p90 = pneg %p84
      %p91 = scmp.eq.s32.totalorder %s23, 1
      %p92 = por %p90, %p91
      %p93 = scmp.ne.s32.totalorder %s85, %s88
      %p94 = scmp.eq.s32.totalorder %s23, 0
      %p95 = por %p93, %p94
      %p96 = scmp.ne.s32.totalorder %s85, %s88
      %p97 = scmp.eq.s32.totalorder %s28, 1
      %p98 = por %p96, %p97
      %p99 = scmp.ne.s32.totalorder %s88, %s89
      %p100 = scmp.eq.s32.totalorder %s28, 0
      %p101 = por %p99, %p100
      %p102 = scmp.ne.s32.totalorder %s88, %s89
      %p103 = scmp.eq.s32.totalorder %s29, 1
      %p104 = por %p102, %p103
      %p106 = scmp.ne.s32.totalorder %s89, %s105
      %p107 = scmp.eq.s32.totalorder %s29, 0
      %p108 = por %p106, %p107
      %s109 = ssub.s32 %s23, %s30
      %p110 = scmp.eq.s32.totalorder %s109, 0
      %s112 = sadd.s32 %s111, 1
      %s113 = scalar_select %p110, %s111, %s112
      %p116 = pneg %p110
      %p117 = scmp.eq.s32.totalorder %s23, 1
      %p118 = por %p116, %p117
      %p119 = scmp.ne.s32.totalorder %s111, %s114
      %p120 = scmp.eq.s32.totalorder %s23, 0
      %p121 = por %p119, %p120
      %p122 = scmp.ne.s32.totalorder %s111, %s114
      %p123 = scmp.eq.s32.totalorder %s28, 1
      %p124 = por %p122, %p123
      %p125 = scmp.ne.s32.totalorder %s114, %s115
      %p126 = scmp.eq.s32.totalorder %s28, 0
      %p127 = por %p125, %p126
      %p128 = scmp.ne.s32.totalorder %s114, %s115
      %p129 = scmp.eq.s32.totalorder %s29, 1
      %p130 = por %p128, %p129
      %p132 = scmp.ne.s32.totalorder %s115, %s131
      %p133 = scmp.eq.s32.totalorder %s29, 0
      %p134 = por %p132, %p133
      %s136 = sadd.s32 %s135, 1
      %p139 = scmp.eq.s32.totalorder %s23, 1
      %p140 = scmp.ne.s32.totalorder %s135, %s137
      %p141 = scmp.eq.s32.totalorder %s23, 0
      %p142 = por %p140, %p141
      %p143 = scmp.ne.s32.totalorder %s135, %s137
      %p144 = scmp.eq.s32.totalorder %s28, 1
      %p145 = por %p143, %p144
      %p146 = scmp.ne.s32.totalorder %s137, %s138
      %p147 = scmp.eq.s32.totalorder %s28, 0
      %p148 = por %p146, %p147
      %p149 = scmp.ne.s32.totalorder %s137, %s138
      %p150 = scmp.eq.s32.totalorder %s29, 1
      %p151 = por %p149, %p150
      %p153 = scmp.ne.s32.totalorder %s138, %s152
      %p154 = scmp.eq.s32.totalorder %s29, 0
      %p155 = por %p153, %p154
      %s157 = sadd.s32 %s156, 1
      %p160 = scmp.eq.s32.totalorder %s23, 1
      %p161 = scmp.ne.s32.totalorder %s156, %s158
      %p162 = scmp.eq.s32.totalorder %s23, 0
      %p163 = por %p161, %p162
      %p164 = scmp.ne.s32.totalorder %s156, %s158
      %p165 = scmp.eq.s32.totalorder %s28, 1
      %p166 = por %p164, %p165
      %p167 = scmp.ne.s32.totalorder %s158, %s159
      %p168 = scmp.eq.s32.totalorder %s28, 0
      %p169 = por %p167, %p168
      %p170 = scmp.ne.s32.totalorder %s158, %s159
      %p171 = scmp.eq.s32.totalorder %s29, 1
      %p172 = por %p170, %p171
      %p174 = scmp.ne.s32.totalorder %s159, %s173
      %p175 = scmp.eq.s32.totalorder %s29, 0
      %p176 = por %p174, %p175
      %s178 = sadd.s32 %s177, 1
      %p181 = scmp.eq.s32.totalorder %s23, 1
      %p182 = scmp.ne.s32.totalorder %s177, %s179
      %p183 = scmp.eq.s32.totalorder %s23, 0
      %p184 = por %p182, %p183
      %p185 = scmp.ne.s32.totalorder %s177, %s179
      %p186 = scmp.eq.s32.totalorder %s28, 1
      %p187 = por %p185, %p186
      %p188 = scmp.ne.s32.totalorder %s179, %s180
      %p189 = scmp.eq.s32.totalorder %s28, 0
      %p190 = por %p188, %p189
      %p191 = scmp.ne.s32.totalorder %s179, %s180
      %p192 = scmp.eq.s32.totalorder %s29, 1
      %p193 = por %p191, %p192
      %p195 = scmp.ne.s32.totalorder %s180, %s194
      %p196 = scmp.eq.s32.totalorder %s29, 0
      %p197 = por %p195, %p196
      %s199 = sadd.s32 %s198, 1
      %p202 = scmp.eq.s32.totalorder %s23, 1
      %p203 = scmp.ne.s32.totalorder %s198, %s200
      %p204 = scmp.eq.s32.totalorder %s23, 0
      %p205 = por %p203, %p204
      %p206 = scmp.ne.s32.totalorder %s198, %s200
      %p207 = scmp.eq.s32.totalorder %s28, 1
      %p208 = por %p206, %p207
      %p209 = scmp.ne.s32.totalorder %s200, %s201
      %p210 = scmp.eq.s32.totalorder %s28, 0
      %p211 = por %p209, %p210
      %p212 = scmp.ne.s32.totalorder %s200, %s201
      %p213 = scmp.eq.s32.totalorder %s29, 1
      %p214 = por %p212, %p213
      %p216 = scmp.ne.s32.totalorder %s201, %s215
      %p217 = scmp.eq.s32.totalorder %s29, 0
      %p218 = por %p216, %p217
      %s220 = sadd.s32 %s219, 1
      %p223 = scmp.eq.s32.totalorder %s23, 1
      %p224 = scmp.ne.s32.totalorder %s219, %s221
      %p225 = scmp.eq.s32.totalorder %s23, 0
      %p226 = por %p224, %p225
      %p227 = scmp.ne.s32.totalorder %s219, %s221
      %p228 = scmp.eq.s32.totalorder %s28, 1
      %p229 = por %p227, %p228
      %p230 = scmp.ne.s32.totalorder %s221, %s222
      %p231 = scmp.eq.s32.totalorder %s28, 0
      %p232 = por %p230, %p231
      %p233 = scmp.ne.s32.totalorder %s221, %s222
      %p234 = scmp.eq.s32.totalorder %s29, 1
      %p235 = por %p233, %p234
      %p237 = scmp.ne.s32.totalorder %s222, %s236
      %p238 = scmp.eq.s32.totalorder %s29, 0
      %p239 = por %p237, %p238
      %s241 = sadd.s32 %s240, 1
      %p244 = scmp.eq.s32.totalorder %s23, 1
      %p245 = scmp.ne.s32.totalorder %s240, %s242
      %p246 = scmp.eq.s32.totalorder %s23, 0
      %p247 = por %p245, %p246
      %p248 = scmp.ne.s32.totalorder %s240, %s242
      %p249 = scmp.eq.s32.totalorder %s28, 1
      %p250 = por %p248, %p249
      %p251 = scmp.ne.s32.totalorder %s242, %s243
      %p252 = scmp.eq.s32.totalorder %s28, 0
      %p253 = por %p251, %p252
      %p254 = scmp.ne.s32.totalorder %s242, %s243
      %p255 = scmp.eq.s32.totalorder %s29, 1
      %p256 = por %p254, %p255
      %p258 = scmp.ne.s32.totalorder %s243, %s257
      %p259 = scmp.eq.s32.totalorder %s29, 0
      %p260 = por %p258, %p259
      %s262 = sadd.s32 %s261, 1
      %p265 = scmp.eq.s32.totalorder %s23, 1
      %p266 = scmp.ne.s32.totalorder %s261, %s263
      %p267 = scmp.eq.s32.totalorder %s23, 0
      %p268 = por %p266, %p267
      %p269 = scmp.ne.s32.totalorder %s261, %s263
      %p270 = scmp.eq.s32.totalorder %s28, 1
      %p271 = por %p269, %p270
      %p272 = scmp.ne.s32.totalorder %s263, %s264
      %p273 = scmp.eq.s32.totalorder %s28, 0
      %p274 = por %p272, %p273
      %p275 = scmp.ne.s32.totalorder %s263, %s264
      %p276 = scmp.eq.s32.totalorder %s29, 1
      %p277 = por %p275, %p276
      %p279 = scmp.ne.s32.totalorder %s264, %s278
      %p280 = scmp.eq.s32.totalorder %s29, 0
      %p281 = por %p279, %p280
      %s283 = sadd.s32 %s282, 1
      %p286 = scmp.eq.s32.totalorder %s23, 1
      %p287 = scmp.ne.s32.totalorder %s282, %s284
      %p288 = scmp.eq.s32.totalorder %s23, 0
      %p289 = por %p287, %p288
      %p290 = scmp.ne.s32.totalorder %s282, %s284
      %p291 = scmp.eq.s32.totalorder %s28, 1
      %p292 = por %p290, %p291
      %p293 = scmp.ne.s32.totalorder %s284, %s285
      %p294 = scmp.eq.s32.totalorder %s28, 0
      %p295 = por %p293, %p294
      %p296 = scmp.ne.s32.totalorder %s284, %s285
      %p297 = scmp.eq.s32.totalorder %s29, 1
      %p298 = por %p296, %p297
      %p300 = scmp.ne.s32.totalorder %s285, %s299
      %p301 = scmp.eq.s32.totalorder %s29, 0
      %p302 = por %p300, %p301
      %s304 = sadd.s32 %s303, 1
      %p307 = scmp.eq.s32.totalorder %s23, 1
      %p308 = scmp.ne.s32.totalorder %s303, %s305
      %p309 = scmp.eq.s32.totalorder %s23, 0
      %p310 = por %p308, %p309
      %p311 = scmp.ne.s32.totalorder %s303, %s305
      %p312 = scmp.eq.s32.totalorder %s28, 1
      %p313 = por %p311, %p312
      %p314 = scmp.ne.s32.totalorder %s305, %s306
      %p315 = scmp.eq.s32.totalorder %s28, 0
      %p316 = por %p314, %p315
      %p317 = scmp.ne.s32.totalorder %s305, %s306
      %p318 = scmp.eq.s32.totalorder %s29, 1
      %p319 = por %p317, %p318
      %p321 = scmp.ne.s32.totalorder %s306, %s320
      %p322 = scmp.eq.s32.totalorder %s29, 0
      %p323 = por %p321, %p322
      %s324 = ssub.s32 %s23, %s30
      %p325 = scmp.eq.s32.totalorder %s324, 0
      %s327 = sadd.s32 %s326, 1
      %s328 = scalar_select %p325, %s326, %s327
      %p331 = pneg %p325
      %p332 = scmp.eq.s32.totalorder %s23, 1
      %p333 = por %p331, %p332
      %p334 = scmp.ne.s32.totalorder %s326, %s329
      %p335 = scmp.eq.s32.totalorder %s23, 0
      %p336 = por %p334, %p335
      %p337 = scmp.ne.s32.totalorder %s326, %s329
      %p338 = scmp.eq.s32.totalorder %s28, 1
      %p339 = por %p337, %p338
      %p340 = scmp.ne.s32.totalorder %s329, %s330
      %p341 = scmp.eq.s32.totalorder %s28, 0
      %p342 = por %p340, %p341
      %p343 = scmp.ne.s32.totalorder %s329, %s330
      %p344 = scmp.eq.s32.totalorder %s29, 1
      %p345 = por %p343, %p344
      %p347 = scmp.ne.s32.totalorder %s330, %s346
      %p348 = scmp.eq.s32.totalorder %s29, 0
      %p349 = por %p347, %p348
      %p350 = scmp.le.s32.totalorder 1, %s23
      %p351 = scmp.lt.s32.totalorder %s23, 3
      %p352 = pnand %p350, %p351
      %p353 = pneg %p352
      // Predicated region
      $region9: #{tpu_custom_call.1} parent=5 // pred_check
        _
      $region10: #{tpu_custom_call.1} parent=5 // pred_check_branch
        %355 = sbr.rel (%p352) target = $region12
      $region11: #{tpu_custom_call.1} parent=5 // pred_region
        %s356 = ssub.s32 %s23, 1
        // Predicated region
        $region13: #{tpu_custom_call.1} parent=11 // pred_check
          %p357 = pneg %p148
        $region14: #{tpu_custom_call.1} parent=11 // pred_check_branch
          %359 = sbr.rel (%p357) target = $region16
        $region15: #{tpu_custom_call.1} parent=11 // pred_region
          _
        $region16: #{tpu_custom_call.1} parent=11 // pred_fallthru
          _
        // Predicated region
        $region17: #{tpu_custom_call.1} parent=11 // pred_check
          %p360 = pneg %p169
        $region18: #{tpu_custom_call.1} parent=11 // pred_check_branch
          %362 = sbr.rel (%p360) target = $region20
        $region19: #{tpu_custom_call.1} parent=11 // pred_region
          _
        $region20: #{tpu_custom_call.1} parent=11 // pred_fallthru
          _
        // Predicated region
        $region21: #{tpu_custom_call.1} parent=11 // pred_check
          %p363 = pneg %p190
        $region22: #{tpu_custom_call.1} parent=11 // pred_check_branch
          %365 = sbr.rel (%p363) target = $region24
        $region23: #{tpu_custom_call.1} parent=11 // pred_region
          _
        $region24: #{tpu_custom_call.1} parent=11 // pred_fallthru
          _
        // Predicated region
        $region25: #{tpu_custom_call.1} parent=11 // pred_check
          %p366 = pneg %p211
        $region26: #{tpu_custom_call.1} parent=11 // pred_check_branch
          %368 = sbr.rel (%p366) target = $region28
        $region27: #{tpu_custom_call.1} parent=11 // pred_region
          _
        $region28: #{tpu_custom_call.1} parent=11 // pred_fallthru
          _
        // Predicated region
        $region29: #{tpu_custom_call.1} parent=11 // pred_check
          %p369 = pneg %p232
        $region30: #{tpu_custom_call.1} parent=11 // pred_check_branch
          %371 = sbr.rel (%p369) target = $region32
        $region31: #{tpu_custom_call.1} parent=11 // pred_region
          _
        $region32: #{tpu_custom_call.1} parent=11 // pred_fallthru
          _
        // Predicated region
        $region33: #{tpu_custom_call.1} parent=11 // pred_check
          %p372 = pneg %p253
        $region34: #{tpu_custom_call.1} parent=11 // pred_check_branch
          %374 = sbr.rel (%p372) target = $region36
        $region35: #{tpu_custom_call.1} parent=11 // pred_region
          _
        $region36: #{tpu_custom_call.1} parent=11 // pred_fallthru
          _
        // Predicated region
        $region37: #{tpu_custom_call.1} parent=11 // pred_check
          %p375 = pneg %p274
        $region38: #{tpu_custom_call.1} parent=11 // pred_check_branch
          %377 = sbr.rel (%p375) target = $region40
        $region39: #{tpu_custom_call.1} parent=11 // pred_region
          _
        $region40: #{tpu_custom_call.1} parent=11 // pred_fallthru
          _
        // Predicated region
        $region41: #{tpu_custom_call.1} parent=11 // pred_check
          %p378 = pneg %p295
        $region42: #{tpu_custom_call.1} parent=11 // pred_check_branch
          %380 = sbr.rel (%p378) target = $region44
        $region43: #{tpu_custom_call.1} parent=11 // pred_region
          _
        $region44: #{tpu_custom_call.1} parent=11 // pred_fallthru
          _
        // Predicated region
        $region45: #{tpu_custom_call.1} parent=11 // pred_check
          %p381 = pneg %p316
        $region46: #{tpu_custom_call.1} parent=11 // pred_check_branch
          %383 = sbr.rel (%p381) target = $region48
        $region47: #{tpu_custom_call.1} parent=11 // pred_region
          _
        $region48: #{tpu_custom_call.1} parent=11 // pred_fallthru
          _
      $region12: #{tpu_custom_call.1} parent=5 // pred_fallthru
        _
      %p384 = scmp.lt.s32.totalorder %s23, 2
      // Predicated region
      $region49: #{tpu_custom_call.1} parent=5 // pred_check
        %p385 = pneg %p384
      $region50: #{tpu_custom_call.1} parent=5 // pred_check_branch
        %387 = sbr.rel (%p385) target = $region52
      $region51: #{tpu_custom_call.1} parent=5 // pred_region
        // Predicated region
        $region53: #{tpu_custom_call.1} parent=51 // pred_check
          %p388 = pneg %p43
        $region54: #{tpu_custom_call.1} parent=51 // pred_check_branch
          %390 = sbr.rel (%p388) target = $region56
        $region55: #{tpu_custom_call.1} parent=51 // pred_region
          %p391 = scmp.lt.s32.totalorder %s23, 1
          %s392 = scalar_select %p391, %s23, 1
          %s393 = smul.addr %s392, 2
          %s394 = smul.addr %s393, 4
          %s395 = scalar_lea.vmem %s0, %s394
        $region56: #{tpu_custom_call.1} parent=51 // pred_fallthru
          _
        // Predicated region
        $region57: #{tpu_custom_call.1} parent=51 // pred_check
          %p396 = pneg %p69
        $region58: #{tpu_custom_call.1} parent=51 // pred_check_branch
          %398 = sbr.rel (%p396) target = $region60
        $region59: #{tpu_custom_call.1} parent=51 // pred_region
          %p399 = scmp.lt.s32.totalorder %s23, 1
          %s400 = scalar_select %p399, %s23, 1
          %s401 = smul.addr %s400, 2
          %s402 = smul.addr %s401, 8
          %s403 = scalar_lea.vmem %s1, %s402
        $region60: #{tpu_custom_call.1} parent=51 // pred_fallthru
          _
        // Predicated region
        $region61: #{tpu_custom_call.1} parent=51 // pred_check
          %p404 = pneg %p95
        $region62: #{tpu_custom_call.1} parent=51 // pred_check_branch
          %406 = sbr.rel (%p404) target = $region64
        $region63: #{tpu_custom_call.1} parent=51 // pred_region
          %p407 = scmp.lt.s32.totalorder %s23, 1
          %s408 = scalar_select %p407, %s23, 1
          %s409 = smul.addr %s408, 2
          %s410 = smul.addr %s409, 4
          %s411 = scalar_lea.vmem %s2, %s410
        $region64: #{tpu_custom_call.1} parent=51 // pred_fallthru
          _
        // Predicated region
        $region65: #{tpu_custom_call.1} parent=51 // pred_check
          %p412 = pneg %p121
        $region66: #{tpu_custom_call.1} parent=51 // pred_check_branch
          %414 = sbr.rel (%p412) target = $region68
        $region67: #{tpu_custom_call.1} parent=51 // pred_region
          %p415 = scmp.lt.s32.totalorder %s23, 1
          %s416 = scalar_select %p415, %s23, 1
          %s417 = smul.addr %s416, 2
          %s418 = smul.addr %s417, 8
          %s419 = scalar_lea.vmem %s3, %s418
        $region68: #{tpu_custom_call.1} parent=51 // pred_fallthru
          _
      $region52: #{tpu_custom_call.1} parent=5 // pred_fallthru
        _
      %p420 = scmp.le.s32.totalorder 1, %s23
      %p421 = scmp.lt.s32.totalorder %s23, 3
      %p422 = pnand %p420, %p421
      %p423 = pneg %p422
      // Predicated region
      $region69: #{tpu_custom_call.1} parent=5 // pred_check
        _
      $region70: #{tpu_custom_call.1} parent=5 // pred_check_branch
        %425 = sbr.rel (%p422) target = $region72
      $region71: #{tpu_custom_call.1} parent=5 // pred_region
        %s426 = ssub.s32 %s23, 1
        %p427 = scmp.lt.s32.totalorder %s28, 1
        %s428 = scalar_select %p427, %s28, 1
        %s429 = smul.addr %s428, 2
        %s430 = smul.addr %s429, 4
        %s431 = scalar_lea.vmem %s0, %s430
        %p432 = pneg %p49
        %p433 = pneg %p46
        %p434 = scmp.lt.s32.totalorder %s28, 1
        %s435 = scalar_select %p434, %s28, 1
        %s436 = smul.addr %s435, 2
        %s437 = smul.addr %s436, 8
        %s438 = scalar_lea.vmem %s1, %s437
        %p439 = pneg %p75
        %p440 = pneg %p72
        %p441 = scmp.lt.s32.totalorder %s28, 1
        %s442 = scalar_select %p441, %s28, 1
        %s443 = smul.addr %s442, 2
        %s444 = smul.addr %s443, 4
        %s445 = scalar_lea.vmem %s2, %s444
        %p446 = pneg %p101
        %p447 = pneg %p98
        %p448 = scmp.lt.s32.totalorder %s28, 1
        %s449 = scalar_select %p448, %s28, 1
        %s450 = smul.addr %s449, 2
        %s451 = smul.addr %s450, 8
        %s452 = scalar_lea.vmem %s3, %s451
        %p453 = pneg %p127
        %p454 = pneg %p124
        %p455 = pneg %p148
        %p456 = pneg %p145
        %p457 = pneg %p169
        %p458 = pneg %p166
        %p459 = pneg %p190
        %p460 = pneg %p187
        %p461 = pneg %p211
        %p462 = pneg %p208
        %p463 = pneg %p232
        %p464 = pneg %p229
        %p465 = pneg %p253
        %p466 = pneg %p250
        %p467 = pneg %p274
        %p468 = pneg %p271
        %p469 = pneg %p295
        %p470 = pneg %p292
        %p471 = pneg %p316
        %p472 = pneg %p313
        %p473 = pneg %p342
        %p474 = pneg %p339
        %s475 = sand.u32 %s329, 1
        %s476 = scalar_lea.sflag [#allocation4], %s475
        %s477 = sand.u32 %s329, 1
        %s478 = smul.addr %s477, 2
        %s479 = scalar_lea.vmem [#allocation3], %s478
        %p480 = scmp.lt.s32.totalorder %s28, 1
        %s481 = scalar_select %p480, %s28, 1
        %s482 = smul.addr %s481, 2
        %s483 = smul.addr %s482, 4
        %s484 = scalar_lea.vmem %s0, %s483
        %p485 = scmp.lt.s32.totalorder %s28, 1
        %s486 = scalar_select %p485, %s28, 1
        %s487 = smul.addr %s486, 2
        %s488 = smul.addr %s487, 8
        %s489 = scalar_lea.vmem %s1, %s488
        %p490 = scmp.lt.s32.totalorder %s28, 1
        %s491 = scalar_select %p490, %s28, 1
        %s492 = smul.addr %s491, 2
        %s493 = smul.addr %s492, 4
        %s494 = scalar_lea.vmem %s2, %s493
        %p495 = scmp.lt.s32.totalorder %s28, 1
        %s496 = scalar_select %p495, %s28, 1
        %s497 = smul.addr %s496, 2
        %s498 = smul.addr %s497, 8
        %s499 = scalar_lea.vmem %s3, %s498
        %v500 = vld [vmem:[%s4] sm:$0xff]
        %v501 = vld [vmem:[%s4 + $0x8] sm:$0xff]
        %v502 = vld [vmem:[%s484] sm:$0x77]
        %v503 = vld [vmem:[%s5] sm:$0xff]
        %v504 = vld [vmem:[%s5 + $0x8] sm:$0xff]
        %v505 = vld [vmem:[%s489] sm:$0x3f]
        %v506 = vld [vmem:[%s489 + $0x8] sm:$0x3f]
        %vm507 = vcmask 48128
        %v509 = vsel %vm507, %v503, 0
        %v512 = vsel %vm507, %v504, 0
        %vm514 = vcmask 1045504
        %v516 = vsel %vm514, %v505, 0
        %v519 = vsel %vm514, %v506, 0
        %521 = vmatprep.subr.mxu0 %v519
        %522 = vmatpush1.msra.mxu0 %v516
        %523 = vmatprep.subr.mxu0 0.0
        %524 = vmatpush1.msra.mxu0 0.0
        %525 = vmatprep.subr.mxu0 0.0
        %526 = vmatpush1.msra.mxu0 0.0
        %527 = vmatprep.subr.mxu0 0.0
        %528 = vmatpush1.msra.mxu0 0.0
        %529 = vmatprep.subr.mxu0 0.0
        %530 = vmatpush1.msra.mxu0 0.0
        %531 = vmatprep.subr.mxu0 0.0
        %532 = vmatpush1.msra.mxu0 0.0
        %533 = vmatprep.subr.mxu0 0.0
        %534 = vmatpush1.msra.mxu0 0.0
        %535 = vmatprep.subr.mxu0 0.0
        %536 = vmatpush1.msra.mxu0 0.0
        %537 = vmatprep.subr.mxu0 0.0
        %538 = vmatpush1.msra.mxu0 0.0
        %539 = vmatprep.subr.mxu0 0.0
        %540 = vmatpush1.msra.mxu0 0.0
        %541 = vmatprep.subr.mxu0 0.0
        %542 = vmatpush1.msra.mxu0 0.0
        %543 = vmatprep.subr.mxu0 0.0
        %544 = vmatpush1.msra.mxu0 0.0
        %545 = vmatprep.subr.mxu0 0.0
        %546 = vmatpush1.msra.mxu0 0.0
        %547 = vmatprep.subr.mxu0 0.0
        %548 = vmatpush1.msra.mxu0 0.0
        %549 = vmatprep.subr.mxu0 0.0
        %550 = vmatpush1.msra.mxu0 0.0
        %551 = vmatprep.subr.mxu0 0.0
        %552 = vmatpush1.msra.mxu0 0.0
        %553 = vmatprep.subr.mxu0 0.0
        %554 = vmatpush1.msra.mxu0 0.0
        %555 = vmatprep.subr.mxu0 0.0
        %556 = vmatpush1.msra.mxu0 0.0
        %557 = vmatprep.subr.mxu0 0.0
        %558 = vmatpush1.msra.mxu0 0.0
        %559 = vmatprep.subr.mxu0 0.0
        %560 = vmatpush1.msra.mxu0 0.0
        %561 = vmatprep.subr.mxu0 0.0
        %562 = vmatpush1.msra.mxu0 0.0
        %563 = vmatprep.subr.mxu0 0.0
        %564 = vmatpush1.msra.mxu0 0.0
        %565 = vmatprep.subr.mxu0 0.0
        %566 = vmatpush1.msra.mxu0 0.0
        %567 = vmatprep.subr.mxu0 0.0
        %568 = vmatpush1.msra.mxu0 0.0
        %569 = vmatprep.subr.mxu0 0.0
        %570 = vmatpush1.msra.mxu0 0.0
        %571 = vmatprep.subr.mxu0 0.0
        %572 = vmatpush1.msra.mxu0 0.0
        %573 = vmatprep.subr.mxu0 0.0
        %574 = vmatpush1.msra.mxu0 0.0
        %575 = vmatprep.subr.mxu0 0.0
        %576 = vmatpush1.msra.mxu0 0.0
        %577 = vmatprep.subr.mxu0 0.0
        %578 = vmatpush1.msra.mxu0 0.0
        %579 = vmatprep.subr.mxu0 0.0
        %580 = vmatpush1.msra.mxu0 0.0
        %581 = vmatprep.subr.mxu0 0.0
        %582 = vmatpush1.msra.mxu0 0.0
        %583 = vmatprep.subr.mxu0 0.0
        %584 = vmatpush1.msra.mxu0 0.0
        %585 = vmatprep.mubr.f32.mxu0 0.0
        %586 = vmatmul.mubr.f32.gmra.mrb[0].mxu0 %v509
        %v587 = vpop.f32.mrb[0].mxu0
        %v588 = vadd.f32 0.0, %v587
        %v589 = vpop.f32.mrb[0].mxu0
        %v590 = vadd.f32 0.0, %v589
        %591 = vmatprep.mubr.f32.mxu0 0.0
        %592 = vmatmul.mubr.f32.gmra.mrb[0].mxu0 %v512
        %v593 = vpop.f32.mrb[0].mxu0
        %v594 = vadd.f32 0.0, %v593
        %v595 = vpop.f32.mrb[0].mxu0
        %v596 = vadd.f32 0.0, %v595
        %597 = vdwg.mxu0
        %v599 = vcombine.high %v502, %v502
        %vm600 = vcmask 23552
        %v602 = vsel %vm600, %v500, 0
        %v605 = vsel %vm600, %v501, 0
        %vm607 = vcmask 1042432
        %v608 = vsel %vm607, %v502, 0
        %v610 = vsel %vm607, %v599, 0
        %612 = vmatprep.subr.mxu0 %v610
        %613 = vmatpush1.msra.mxu0 %v608
        %614 = vmatprep.subr.mxu0 0.0
        %615 = vmatpush1.msra.mxu0 0.0
        %616 = vmatprep.subr.mxu0 0.0
        %617 = vmatpush1.msra.mxu0 0.0
        %618 = vmatprep.subr.mxu0 0.0
        %619 = vmatpush1.msra.mxu0 0.0
        %620 = vmatprep.subr.mxu0 0.0
        %621 = vmatpush1.msra.mxu0 0.0
        %622 = vmatprep.subr.mxu0 0.0
        %623 = vmatpush1.msra.mxu0 0.0
        %624 = vmatprep.subr.mxu0 0.0
        %625 = vmatpush1.msra.mxu0 0.0
        %626 = vmatprep.subr.mxu0 0.0
        %627 = vmatpush1.msra.mxu0 0.0
        %628 = vmatprep.subr.mxu0 0.0
        %629 = vmatpush1.msra.mxu0 0.0
        %630 = vmatprep.subr.mxu0 0.0
        %631 = vmatpush1.msra.mxu0 0.0
        %632 = vmatprep.subr.mxu0 0.0
        %633 = vmatpush1.msra.mxu0 0.0
        %634 = vmatprep.subr.mxu0 0.0
        %635 = vmatpush1.msra.mxu0 0.0
        %636 = vmatprep.subr.mxu0 0.0
        %637 = vmatpush1.msra.mxu0 0.0
        %638 = vmatprep.subr.mxu0 0.0
        %639 = vmatpush1.msra.mxu0 0.0
        %640 = vmatprep.subr.mxu0 0.0
        %641 = vmatpush1.msra.mxu0 0.0
        %642 = vmatprep.subr.mxu0 0.0
        %643 = vmatpush1.msra.mxu0 0.0
        %644 = vmatprep.subr.mxu0 0.0
        %645 = vmatpush1.msra.mxu0 0.0
        %646 = vmatprep.subr.mxu0 0.0
        %647 = vmatpush1.msra.mxu0 0.0
        %648 = vmatprep.subr.mxu0 0.0
        %649 = vmatpush1.msra.mxu0 0.0
        %650 = vmatprep.subr.mxu0 0.0
        %651 = vmatpush1.msra.mxu0 0.0
        %652 = vmatprep.subr.mxu0 0.0
        %653 = vmatpush1.msra.mxu0 0.0
        %654 = vmatprep.subr.mxu0 0.0
        %655 = vmatpush1.msra.mxu0 0.0
        %656 = vmatprep.subr.mxu0 0.0
        %657 = vmatpush1.msra.mxu0 0.0
        %658 = vmatprep.subr.mxu0 0.0
        %659 = vmatpush1.msra.mxu0 0.0
        %660 = vmatprep.subr.mxu0 0.0
        %661 = vmatpush1.msra.mxu0 0.0
        %662 = vmatprep.subr.mxu0 0.0
        %663 = vmatpush1.msra.mxu0 0.0
        %664 = vmatprep.subr.mxu0 0.0
        %665 = vmatpush1.msra.mxu0 0.0
        %666 = vmatprep.subr.mxu0 0.0
        %667 = vmatpush1.msra.mxu0 0.0
        %668 = vmatprep.subr.mxu0 0.0
        %669 = vmatpush1.msra.mxu0 0.0
        %670 = vmatprep.subr.mxu0 0.0
        %671 = vmatpush1.msra.mxu0 0.0
        %672 = vmatprep.subr.mxu0 0.0
        %673 = vmatpush1.msra.mxu0 0.0
        %674 = vmatprep.subr.mxu0 0.0
        %675 = vmatpush1.msra.mxu0 0.0
        %676 = vmatprep.mubr.f32.mxu0 0.0
        %677 = vmatmul.mubr.f32.gmra.mrb[0].mxu0 %v602
        %v678 = vpop.f32.mrb[0].mxu0
        %v679 = vadd.f32 %v588, %v678
        %v680 = vpop.f32.mrb[0].mxu0
        %v681 = vadd.f32 %v590, %v680
        %682 = vmatprep.mubr.f32.mxu0 0.0
        %683 = vmatmul.mubr.f32.gmra.mrb[0].mxu0 %v605
        %v684 = vpop.f32.mrb[0].mxu0
        %v685 = vadd.f32 %v594, %v684
        %v686 = vpop.f32.mrb[0].mxu0
        %v687 = vadd.f32 %v596, %v686
        %688 = vdwg.mxu0
        %v689 = vld [vmem:[%s6] sm:$0xff]
        %v690 = vld [vmem:[%s6 + $0x8] sm:$0xff]
        %v691 = vld [vmem:[%s494] sm:$0x77]
        %v693 = vcombine.high %v691, %v691
        %v695 = vsel %vm600, %v689, 0
        %v698 = vsel %vm600, %v690, 0
        %v700 = vsel %vm607, %v691, 0
        %v702 = vsel %vm607, %v693, 0
        %704 = vmatprep.subr.mxu0 %v702
        %705 = vmatpush1.msra.mxu0 %v700
        %706 = vmatprep.subr.mxu0 0.0
        %707 = vmatpush1.msra.mxu0 0.0
        %708 = vmatprep.subr.mxu0 0.0
        %709 = vmatpush1.msra.mxu0 0.0
        %710 = vmatprep.subr.mxu0 0.0
        %711 = vmatpush1.msra.mxu0 0.0
        %712 = vmatprep.subr.mxu0 0.0
        %713 = vmatpush1.msra.mxu0 0.0
        %714 = vmatprep.subr.mxu0 0.0
        %715 = vmatpush1.msra.mxu0 0.0
        %716 = vmatprep.subr.mxu0 0.0
        %717 = vmatpush1.msra.mxu0 0.0
        %718 = vmatprep.subr.mxu0 0.0
        %719 = vmatpush1.msra.mxu0 0.0
        %720 = vmatprep.subr.mxu0 0.0
        %721 = vmatpush1.msra.mxu0 0.0
        %722 = vmatprep.subr.mxu0 0.0
        %723 = vmatpush1.msra.mxu0 0.0
        %724 = vmatprep.subr.mxu0 0.0
        %725 = vmatpush1.msra.mxu0 0.0
        %726 = vmatprep.subr.mxu0 0.0
        %727 = vmatpush1.msra.mxu0 0.0
        %728 = vmatprep.subr.mxu0 0.0
        %729 = vmatpush1.msra.mxu0 0.0
        %730 = vmatprep.subr.mxu0 0.0
        %731 = vmatpush1.msra.mxu0 0.0
        %732 = vmatprep.subr.mxu0 0.0
        %733 = vmatpush1.msra.mxu0 0.0
        %734 = vmatprep.subr.mxu0 0.0
        %735 = vmatpush1.msra.mxu0 0.0
        %736 = vmatprep.subr.mxu0 0.0
        %737 = vmatpush1.msra.mxu0 0.0
        %738 = vmatprep.subr.mxu0 0.0
        %739 = vmatpush1.msra.mxu0 0.0
        %740 = vmatprep.subr.mxu0 0.0
        %741 = vmatpush1.msra.mxu0 0.0
        %742 = vmatprep.subr.mxu0 0.0
        %743 = vmatpush1.msra.mxu0 0.0
        %744 = vmatprep.subr.mxu0 0.0
        %745 = vmatpush1.msra.mxu0 0.0
        %746 = vmatprep.subr.mxu0 0.0
        %747 = vmatpush1.msra.mxu0 0.0
        %748 = vmatprep.subr.mxu0 0.0
        %749 = vmatpush1.msra.mxu0 0.0
        %750 = vmatprep.subr.mxu0 0.0
        %751 = vmatpush1.msra.mxu0 0.0
        %752 = vmatprep.subr.mxu0 0.0
        %753 = vmatpush1.msra.mxu0 0.0
        %754 = vmatprep.subr.mxu0 0.0
        %755 = vmatpush1.msra.mxu0 0.0
        %756 = vmatprep.subr.mxu0 0.0
        %757 = vmatpush1.msra.mxu0 0.0
        %758 = vmatprep.subr.mxu0 0.0
        %759 = vmatpush1.msra.mxu0 0.0
        %760 = vmatprep.subr.mxu0 0.0
        %761 = vmatpush1.msra.mxu0 0.0
        %762 = vmatprep.subr.mxu0 0.0
        %763 = vmatpush1.msra.mxu0 0.0
        %764 = vmatprep.subr.mxu0 0.0
        %765 = vmatpush1.msra.mxu0 0.0
        %766 = vmatprep.subr.mxu0 0.0
        %767 = vmatpush1.msra.mxu0 0.0
        %768 = vmatprep.mubr.f32.mxu0 0.0
        %769 = vmatmul.mubr.f32.gmra.mrb[0].mxu0 %v695
        %v770 = vpop.f32.mrb[0].mxu0
        %v771 = vadd.f32 0.0, %v770
        %v772 = vpop.f32.mrb[0].mxu0
        %v773 = vadd.f32 0.0, %v772
        %774 = vmatprep.mubr.f32.mxu0 0.0
        %775 = vmatmul.mubr.f32.gmra.mrb[0].mxu0 %v698
        %v776 = vpop.f32.mrb[0].mxu0
        %v777 = vadd.f32 0.0, %v776
        %v778 = vpop.f32.mrb[0].mxu0
        %v779 = vadd.f32 0.0, %v778
        %780 = vdwg.mxu0
        %v781 = vadd.f32 %v679, %v771
        %v782 = vadd.f32 %v681, %v773
        %v783 = vadd.f32 %v685, %v777
        %v784 = vadd.f32 %v687, %v779
        %v785 = vld [vmem:[%s7] sm:$0xff]
        %v786 = vld [vmem:[%s7 + $0x8] sm:$0xff]
        %v787 = vld [vmem:[%s499] sm:$0x3f]
        %v788 = vld [vmem:[%s499 + $0x8] sm:$0x3f]
        %v790 = vsel %vm507, %v785, 0
        %v793 = vsel %vm507, %v786, 0
        %v796 = vsel %vm514, %v787, 0
        %v799 = vsel %vm514, %v788, 0
        %801 = vmatprep.subr.mxu0 %v799
        %802 = vmatpush1.msra.mxu0 %v796
        %803 = vmatprep.subr.mxu0 0.0
        %804 = vmatpush1.msra.mxu0 0.0
        %805 = vmatprep.subr.mxu0 0.0
        %806 = vmatpush1.msra.mxu0 0.0
        %807 = vmatprep.subr.mxu0 0.0
        %808 = vmatpush1.msra.mxu0 0.0
        %809 = vmatprep.subr.mxu0 0.0
        %810 = vmatpush1.msra.mxu0 0.0
        %811 = vmatprep.subr.mxu0 0.0
        %812 = vmatpush1.msra.mxu0 0.0
        %813 = vmatprep.subr.mxu0 0.0
        %814 = vmatpush1.msra.mxu0 0.0
        %815 = vmatprep.subr.mxu0 0.0
        %816 = vmatpush1.msra.mxu0 0.0
        %817 = vmatprep.subr.mxu0 0.0
        %818 = vmatpush1.msra.mxu0 0.0
        %819 = vmatprep.subr.mxu0 0.0
        %820 = vmatpush1.msra.mxu0 0.0
        %821 = vmatprep.subr.mxu0 0.0
        %822 = vmatpush1.msra.mxu0 0.0
        %823 = vmatprep.subr.mxu0 0.0
        %824 = vmatpush1.msra.mxu0 0.0
        %825 = vmatprep.subr.mxu0 0.0
        %826 = vmatpush1.msra.mxu0 0.0
        %827 = vmatprep.subr.mxu0 0.0
        %828 = vmatpush1.msra.mxu0 0.0
        %829 = vmatprep.subr.mxu0 0.0
        %830 = vmatpush1.msra.mxu0 0.0
        %831 = vmatprep.subr.mxu0 0.0
        %832 = vmatpush1.msra.mxu0 0.0
        %833 = vmatprep.subr.mxu0 0.0
        %834 = vmatpush1.msra.mxu0 0.0
        %835 = vmatprep.subr.mxu0 0.0
        %836 = vmatpush1.msra.mxu0 0.0
        %837 = vmatprep.subr.mxu0 0.0
        %838 = vmatpush1.msra.mxu0 0.0
        %839 = vmatprep.subr.mxu0 0.0
        %840 = vmatpush1.msra.mxu0 0.0
        %841 = vmatprep.subr.mxu0 0.0
        %842 = vmatpush1.msra.mxu0 0.0
        %843 = vmatprep.subr.mxu0 0.0
        %844 = vmatpush1.msra.mxu0 0.0
        %845 = vmatprep.subr.mxu0 0.0
        %846 = vmatpush1.msra.mxu0 0.0
        %847 = vmatprep.subr.mxu0 0.0
        %848 = vmatpush1.msra.mxu0 0.0
        %849 = vmatprep.subr.mxu0 0.0
        %850 = vmatpush1.msra.mxu0 0.0
        %851 = vmatprep.subr.mxu0 0.0
        %852 = vmatpush1.msra.mxu0 0.0
        %853 = vmatprep.subr.mxu0 0.0
        %854 = vmatpush1.msra.mxu0 0.0
        %855 = vmatprep.subr.mxu0 0.0
        %856 = vmatpush1.msra.mxu0 0.0
        %857 = vmatprep.subr.mxu0 0.0
        %858 = vmatpush1.msra.mxu0 0.0
        %859 = vmatprep.subr.mxu0 0.0
        %860 = vmatpush1.msra.mxu0 0.0
        %861 = vmatprep.subr.mxu0 0.0
        %862 = vmatpush1.msra.mxu0 0.0
        %863 = vmatprep.subr.mxu0 0.0
        %864 = vmatpush1.msra.mxu0 0.0
        %865 = vmatprep.mubr.f32.mxu0 0.0
        %866 = vmatmul.mubr.f32.gmra.mrb[0].mxu0 %v790
        %v867 = vpop.f32.mrb[0].mxu0
        %v868 = vadd.f32 0.0, %v867
        %v869 = vpop.f32.mrb[0].mxu0
        %v870 = vadd.f32 0.0, %v869
        %871 = vmatprep.mubr.f32.mxu0 0.0
        %872 = vmatmul.mubr.f32.gmra.mrb[0].mxu0 %v793
        %v873 = vpop.f32.mrb[0].mxu0
        %v874 = vadd.f32 0.0, %v873
        %v875 = vpop.f32.mrb[0].mxu0
        %v876 = vadd.f32 0.0, %v875
        %877 = vdwg.mxu0
        %v878 = vadd.f32 %v781, %v868
        %v879 = vadd.f32 %v782, %v870
        %v880 = vadd.f32 %v783, %v874
        %v881 = vadd.f32 %v784, %v876
        %v882 = vld [vmem:[%s8] sm:$0xff]
        %v883 = vld [vmem:[%s8 + $0x8] sm:$0xff]
        %885 = vset.pattern.permute.xlu0 0
        %886 = vperm.xlu0 %885, %v882
        %v887 = vpop.permute.xlu0 %886
        %890 = vset.pattern.permute.xlu0 0
        %891 = vperm.xlu0 %890, %v883
        %v892 = vpop.permute.xlu0 %891
        %v894 = vadd.f32 %v878, %v887
        %v895 = vadd.f32 %v879, %v887
        %v896 = vadd.f32 %v880, %v892
        %v897 = vadd.f32 %v881, %v892
        %v898 = vmax.f32 %v894, 0.0
        %v899 = vmax.f32 %v895, 0.0
        %v900 = vmax.f32 %v896, 0.0
        %v901 = vmax.f32 %v897, 0.0
        %v902 = vlaneseq
        %v903 = vand.u32 %v902, 127
        %v904 = vadd.s32 %v903, 128
        %vm905 = vcmp.lt.s32.totalorder %v903, 0
        %v906 = vsub.s32 0, %v903
        %v907 = vsel %vm905, %v906, %v903
        %v908 = vshrl.u32 %v907, 4
        %v909 = vand.u32 %v907, 15
        %v910 = vsub.s32 0, %v909
        %v911 = vsel %vm905, %v910, %v909
        %vm912 = vcmp.lt.s32.totalorder %v904, 0
        %v913 = vsub.s32 0, %v904
        %v914 = vsel %vm912, %v913, %v904
        %v915 = vshrl.u32 %v914, 4
        %v916 = vand.u32 %v914, 15
        %v917 = vsub.s32 0, %v916
        %v918 = vsel %vm912, %v917, %v916
        %vm919 = vcmp.ne.s32.totalorder %v911, 0
        %vm920 = vcmp.ne.s32.totalorder %v918, 0
        %vm921 = vcmp.lt.s32.totalorder %v911, 0
        %vm922 = vcmp.lt.s32.totalorder %v918, 0
        %vm923 = vmand %vm921, %vm919
        %vm924 = vmand %vm922, %vm920
        %v925 = vadd.s32 %v911, 16
        %v926 = vadd.s32 %v918, 16
        %v927 = vsel %vm923, %v925, %v911
        %v928 = vsel %vm924, %v926, %v918
        %vm929 = vcmp.ge.s32.totalorder %v927, 1
        %vm930 = vcmp.ge.s32.totalorder %v928, 1
        %vm931 = vcmp.ge.s32.totalorder %v903, 16
        %vm932 = vcmp.ge.s32.totalorder %v904, 16
        %vm933 = vmand %vm929, %vm931
        %vm934 = vmand %vm930, %vm932
        %v935 = vsel %vm933, 1, 0
        %v936 = vsel %vm934, 1, 0
        %v937 = vcvt.s32.f32 %v935
        %v938 = vcvt.s32.f32 %v936
        %v939 = vsel %vm931, 1, 0
        %v940 = vsel %vm932, 1, 0
        %v941 = vcvt.s32.f32 %v939
        %v942 = vcvt.s32.f32 %v940
        %vm943 = vcmp.lt.s32.totalorder %v927, 15
        %vm944 = vcmp.lt.s32.totalorder %v928, 15
        %vm945 = vmand %vm943, %vm931
        %vm946 = vmand %vm944, %vm932
        %v947 = vsel %vm945, 1, 0
        %v948 = vsel %vm946, 1, 0
        %v949 = vcvt.s32.f32 %v947
        %v950 = vcvt.s32.f32 %v948
        %v951 = vsel %vm929, 1, 0
        %v952 = vsel %vm930, 1, 0
        %v953 = vcvt.s32.f32 %v951
        %v954 = vcvt.s32.f32 %v952
        %v955 = vsel %vm943, 1, 0
        %v956 = vsel %vm944, 1, 0
        %v957 = vcvt.s32.f32 %v955
        %v958 = vcvt.s32.f32 %v956
        %vm959 = vcmp.lt.s32.totalorder %v903, 240
        %vm960 = vcmp.lt.s32.totalorder %v904, 240
        %vm961 = vmand %vm929, %vm959
        %vm962 = vmand %vm930, %vm960
        %v963 = vsel %vm961, 1, 0
        %v964 = vsel %vm962, 1, 0
        %v965 = vcvt.s32.f32 %v963
        %v966 = vcvt.s32.f32 %v964
        %v967 = vsel %vm959, 1, 0
        %v968 = vsel %vm960, 1, 0
        %v969 = vcvt.s32.f32 %v967
        %v970 = vcvt.s32.f32 %v968
        %vm971 = vmand %vm943, %vm959
        %vm972 = vmand %vm944, %vm960
        %v973 = vsel %vm971, 1, 0
        %v974 = vsel %vm972, 1, 0
        %v975 = vcvt.s32.f32 %v973
        %v976 = vcvt.s32.f32 %v974
        %v977 = vld [vmem:[%s9] sm:$0xff]
        %978 = vrot.lane.b32.xlu0 %v898, 17
        %v979 = vpop.permute.xlu0 %978
        %980 = vrot.lane.b32.xlu0 %v900, 17
        %v981 = vpop.permute.xlu0 %980
        %982 = vrot.lane.b32.xlu0 %v899, 17
        %v983 = vpop.permute.xlu0 %982
        %984 = vrot.lane.b32.xlu0 %v901, 17
        %v985 = vpop.permute.xlu0 %984
        %vm986 = vcmp.lt.s32.totalorder %v903, 17
        %v987 = vsel %vm986, %v979, %v983
        %v988 = vsel %vm986, %v981, %v985
        %v989 = vsel %vm986, %v983, %v979
        %v990 = vsel %vm986, %v985, %v981
        %v991 = vmul.f32 %v989, %v937
        %v992 = vmul.f32 %v987, %v938
        %v993 = vmul.f32 %v990, %v937
        %v994 = vmul.f32 %v988, %v938
        %s995 = scalar_lea.vmem %s9, 8
        %v996 = vld [vmem:[%s995] sm:$0xff]
        %997 = vrot.lane.b32.xlu0 %v898, 16
        %v998 = vpop.permute.xlu0 %997
        %999 = vrot.lane.b32.xlu0 %v900, 16
        %v1000 = vpop.permute.xlu0 %999
        %1001 = vrot.lane.b32.xlu0 %v899, 16
        %v1002 = vpop.permute.xlu0 %1001
        %1003 = vrot.lane.b32.xlu0 %v901, 16
        %v1004 = vpop.permute.xlu0 %1003
        %vm1005 = vcmp.lt.s32.totalorder %v903, 16
        %v1006 = vsel %vm1005, %v998, %v1002
        %v1007 = vsel %vm1005, %v1000, %v1004
        %v1008 = vsel %vm1005, %v1002, %v998
        %v1009 = vsel %vm1005, %v1004, %v1000
        %v1010 = vmul.f32 %v1008, %v941
        %v1011 = vmul.f32 %v1006, %v942
        %v1012 = vmul.f32 %v1009, %v941
        %v1013 = vmul.f32 %v1007, %v942
        %vm1014 = vcmask 130048
        %v1016 = vsel %vm1014, %v996, 0
        %1018 = vmatprep.subr.mxu0 %v1011
        %1019 = vmatpush1.msra.mxu0 %v1010
        %1020 = vmatprep.subr.mxu0 %v1013
        %1021 = vmatpush1.msra.mxu0 %v1012
        %1022 = vmatprep.subr.mxu0 0.0
        %1023 = vmatpush1.msra.mxu0 0.0
        %1024 = vmatprep.subr.mxu0 0.0
        %1025 = vmatpush1.msra.mxu0 0.0
        %1026 = vmatprep.subr.mxu0 0.0
        %1027 = vmatpush1.msra.mxu0 0.0
        %1028 = vmatprep.subr.mxu0 0.0
        %1029 = vmatpush1.msra.mxu0 0.0
        %1030 = vmatprep.subr.mxu0 0.0
        %1031 = vmatpush1.msra.mxu0 0.0
        %1032 = vmatprep.subr.mxu0 0.0
        %1033 = vmatpush1.msra.mxu0 0.0
        %1034 = vmatprep.subr.mxu0 0.0
        %1035 = vmatpush1.msra.mxu0 0.0
        %1036 = vmatprep.subr.mxu0 0.0
        %1037 = vmatpush1.msra.mxu0 0.0
        %1038 = vmatprep.subr.mxu0 0.0
        %1039 = vmatpush1.msra.mxu0 0.0
        %1040 = vmatprep.subr.mxu0 0.0
        %1041 = vmatpush1.msra.mxu0 0.0
        %1042 = vmatprep.subr.mxu0 0.0
        %1043 = vmatpush1.msra.mxu0 0.0
        %1044 = vmatprep.subr.mxu0 0.0
        %1045 = vmatpush1.msra.mxu0 0.0
        %1046 = vmatprep.subr.mxu0 0.0
        %1047 = vmatpush1.msra.mxu0 0.0
        %1048 = vmatprep.subr.mxu0 0.0
        %1049 = vmatpush1.msra.mxu0 0.0
        %1050 = vmatprep.subr.mxu0 0.0
        %1051 = vmatpush1.msra.mxu0 0.0
        %1052 = vmatprep.subr.mxu0 0.0
        %1053 = vmatpush1.msra.mxu0 0.0
        %1054 = vmatprep.subr.mxu0 0.0
        %1055 = vmatpush1.msra.mxu0 0.0
        %1056 = vmatprep.subr.mxu0 0.0
        %1057 = vmatpush1.msra.mxu0 0.0
        %1058 = vmatprep.subr.mxu0 0.0
        %1059 = vmatpush1.msra.mxu0 0.0
        %1060 = vmatprep.subr.mxu0 0.0
        %1061 = vmatpush1.msra.mxu0 0.0
        %1062 = vmatprep.subr.mxu0 0.0
        %1063 = vmatpush1.msra.mxu0 0.0
        %1064 = vmatprep.subr.mxu0 0.0
        %1065 = vmatpush1.msra.mxu0 0.0
        %1066 = vmatprep.subr.mxu0 0.0
        %1067 = vmatpush1.msra.mxu0 0.0
        %1068 = vmatprep.subr.mxu0 0.0
        %1069 = vmatpush1.msra.mxu0 0.0
        %1070 = vmatprep.subr.mxu0 0.0
        %1071 = vmatpush1.msra.mxu0 0.0
        %1072 = vmatprep.subr.mxu0 0.0
        %1073 = vmatpush1.msra.mxu0 0.0
        %1074 = vmatprep.subr.mxu0 0.0
        %1075 = vmatpush1.msra.mxu0 0.0
        %1076 = vmatprep.subr.mxu0 0.0
        %1077 = vmatpush1.msra.mxu0 0.0
        %1078 = vmatprep.subr.mxu0 0.0
        %1079 = vmatpush1.msra.mxu0 0.0
        %1080 = vmatprep.subr.mxu0 0.0
        %1081 = vmatpush1.msra.mxu0 0.0
        %1082 = vmatprep.mubr.f32.mxu0 0.0
        %1083 = vmatmul.mubr.f32.gmra.mrb[0].mxu0 %v1016
        %v1084 = vpop.f32.mrb[0].mxu0
        %v1085 = vadd.f32 0.0, %v1084
        %v1086 = vpop.f32.mrb[0].mxu0
        %v1087 = vadd.f32 0.0, %v1086
        %1088 = vdwg.mxu0
        %v1090 = vsel %vm1014, %v977, 0
        %1092 = vmatprep.subr.mxu0 %v992
        %1093 = vmatpush1.msra.mxu0 %v991
        %1094 = vmatprep.subr.mxu0 %v994
        %1095 = vmatpush1.msra.mxu0 %v993
        %1096 = vmatprep.subr.mxu0 0.0
        %1097 = vmatpush1.msra.mxu0 0.0
        %1098 = vmatprep.subr.mxu0 0.0
        %1099 = vmatpush1.msra.mxu0 0.0
        %1100 = vmatprep.subr.mxu0 0.0
        %1101 = vmatpush1.msra.mxu0 0.0
        %1102 = vmatprep.subr.mxu0 0.0
        %1103 = vmatpush1.msra.mxu0 0.0
        %1104 = vmatprep.subr.mxu0 0.0
        %1105 = vmatpush1.msra.mxu0 0.0
        %1106 = vmatprep.subr.mxu0 0.0
        %1107 = vmatpush1.msra.mxu0 0.0
        %1108 = vmatprep.subr.mxu0 0.0
        %1109 = vmatpush1.msra.mxu0 0.0
        %1110 = vmatprep.subr.mxu0 0.0
        %1111 = vmatpush1.msra.mxu0 0.0
        %1112 = vmatprep.subr.mxu0 0.0
        %1113 = vmatpush1.msra.mxu0 0.0
        %1114 = vmatprep.subr.mxu0 0.0
        %1115 = vmatpush1.msra.mxu0 0.0
        %1116 = vmatprep.subr.mxu0 0.0
        %1117 = vmatpush1.msra.mxu0 0.0
        %1118 = vmatprep.subr.mxu0 0.0
        %1119 = vmatpush1.msra.mxu0 0.0
        %1120 = vmatprep.subr.mxu0 0.0
        %1121 = vmatpush1.msra.mxu0 0.0
        %1122 = vmatprep.subr.mxu0 0.0
        %1123 = vmatpush1.msra.mxu0 0.0
        %1124 = vmatprep.subr.mxu0 0.0
        %1125 = vmatpush1.msra.mxu0 0.0
        %1126 = vmatprep.subr.mxu0 0.0
        %1127 = vmatpush1.msra.mxu0 0.0
        %1128 = vmatprep.subr.mxu0 0.0
        %1129 = vmatpush1.msra.mxu0 0.0
        %1130 = vmatprep.subr.mxu0 0.0
        %1131 = vmatpush1.msra.mxu0 0.0
        %1132 = vmatprep.subr.mxu0 0.0
        %1133 = vmatpush1.msra.mxu0 0.0
        %1134 = vmatprep.subr.mxu0 0.0
        %1135 = vmatpush1.msra.mxu0 0.0
        %1136 = vmatprep.subr.mxu0 0.0
        %1137 = vmatpush1.msra.mxu0 0.0
        %1138 = vmatprep.subr.mxu0 0.0
        %1139 = vmatpush1.msra.mxu0 0.0
        %1140 = vmatprep.subr.mxu0 0.0
        %1141 = vmatpush1.msra.mxu0 0.0
        %1142 = vmatprep.subr.mxu0 0.0
        %1143 = vmatpush1.msra.mxu0 0.0
        %1144 = vmatprep.subr.mxu0 0.0
        %1145 = vmatpush1.msra.mxu0 0.0
        %1146 = vmatprep.subr.mxu0 0.0
        %1147 = vmatpush1.msra.mxu0 0.0
        %1148 = vmatprep.subr.mxu0 0.0
        %1149 = vmatpush1.msra.mxu0 0.0
        %1150 = vmatprep.subr.mxu0 0.0
        %1151 = vmatpush1.msra.mxu0 0.0
        %1152 = vmatprep.subr.mxu0 0.0
        %1153 = vmatpush1.msra.mxu0 0.0
        %1154 = vmatprep.subr.mxu0 0.0
        %1155 = vmatpush1.msra.mxu0 0.0
        %1156 = vmatprep.mubr.f32.mxu0 0.0
        %1157 = vmatmul.mubr.f32.gmra.mrb[0].mxu0 %v1090
        %v1158 = vpop.f32.mrb[0].mxu0
        %v1159 = vadd.f32 %v1085, %v1158
        %v1160 = vpop.f32.mrb[0].mxu0
        %v1161 = vadd.f32 %v1087, %v1160
        %1162 = vdwg.mxu0
        %s1163 = scalar_lea.vmem %s9, 16
        %v1164 = vld [vmem:[%s1163] sm:$0xff]
        %1165 = vrot.lane.b32.xlu0 %v898, 15
        %v1166 = vpop.permute.xlu0 %1165
        %1167 = vrot.lane.b32.xlu0 %v900, 15
        %v1168 = vpop.permute.xlu0 %1167
        %1169 = vrot.lane.b32.xlu0 %v899, 15
        %v1170 = vpop.permute.xlu0 %1169
        %1171 = vrot.lane.b32.xlu0 %v901, 15
        %v1172 = vpop.permute.xlu0 %1171
        %vm1173 = vcmp.lt.s32.totalorder %v903, 15
        %v1174 = vsel %vm1173, %v1166, %v1170
        %v1175 = vsel %vm1173, %v1168, %v1172
        %v1176 = vsel %vm1173, %v1170, %v1166
        %v1177 = vsel %vm1173, %v1172, %v1168
        %v1178 = vmul.f32 %v1176, %v949
        %v1179 = vmul.f32 %v1174, %v950
        %v1180 = vmul.f32 %v1177, %v949
        %v1181 = vmul.f32 %v1175, %v950
        %v1183 = vsel %vm1014, %v1164, 0
        %1185 = vmatprep.subr.mxu0 %v1179
        %1186 = vmatpush1.msra.mxu0 %v1178
        %1187 = vmatprep.subr.mxu0 %v1181
        %1188 = vmatpush1.msra.mxu0 %v1180
        %1189 = vmatprep.subr.mxu0 0.0
        %1190 = vmatpush1.msra.mxu0 0.0
        %1191 = vmatprep.subr.mxu0 0.0
        %1192 = vmatpush1.msra.mxu0 0.0
        %1193 = vmatprep.subr.mxu0 0.0
        %1194 = vmatpush1.msra.mxu0 0.0
        %1195 = vmatprep.subr.mxu0 0.0
        %1196 = vmatpush1.msra.mxu0 0.0
        %1197 = vmatprep.subr.mxu0 0.0
        %1198 = vmatpush1.msra.mxu0 0.0
        %1199 = vmatprep.subr.mxu0 0.0
        %1200 = vmatpush1.msra.mxu0 0.0
        %1201 = vmatprep.subr.mxu0 0.0
        %1202 = vmatpush1.msra.mxu0 0.0
        %1203 = vmatprep.subr.mxu0 0.0
        %1204 = vmatpush1.msra.mxu0 0.0
        %1205 = vmatprep.subr.mxu0 0.0
        %1206 = vmatpush1.msra.mxu0 0.0
        %1207 = vmatprep.subr.mxu0 0.0
        %1208 = vmatpush1.msra.mxu0 0.0
        %1209 = vmatprep.subr.mxu0 0.0
        %1210 = vmatpush1.msra.mxu0 0.0
        %1211 = vmatprep.subr.mxu0 0.0
        %1212 = vmatpush1.msra.mxu0 0.0
        %1213 = vmatprep.subr.mxu0 0.0
        %1214 = vmatpush1.msra.mxu0 0.0
        %1215 = vmatprep.subr.mxu0 0.0
        %1216 = vmatpush1.msra.mxu0 0.0
        %1217 = vmatprep.subr.mxu0 0.0
        %1218 = vmatpush1.msra.mxu0 0.0
        %1219 = vmatprep.subr.mxu0 0.0
        %1220 = vmatpush1.msra.mxu0 0.0
        %1221 = vmatprep.subr.mxu0 0.0
        %1222 = vmatpush1.msra.mxu0 0.0
        %1223 = vmatprep.subr.mxu0 0.0
        %1224 = vmatpush1.msra.mxu0 0.0
        %1225 = vmatprep.subr.mxu0 0.0
        %1226 = vmatpush1.msra.mxu0 0.0
        %1227 = vmatprep.subr.mxu0 0.0
        %1228 = vmatpush1.msra.mxu0 0.0
        %1229 = vmatprep.subr.mxu0 0.0
        %1230 = vmatpush1.msra.mxu0 0.0
        %1231 = vmatprep.subr.mxu0 0.0
        %1232 = vmatpush1.msra.mxu0 0.0
        %1233 = vmatprep.subr.mxu0 0.0
        %1234 = vmatpush1.msra.mxu0 0.0
        %1235 = vmatprep.subr.mxu0 0.0
        %1236 = vmatpush1.msra.mxu0 0.0
        %1237 = vmatprep.subr.mxu0 0.0
        %1238 = vmatpush1.msra.mxu0 0.0
        %1239 = vmatprep.subr.mxu0 0.0
        %1240 = vmatpush1.msra.mxu0 0.0
        %1241 = vmatprep.subr.mxu0 0.0
        %1242 = vmatpush1.msra.mxu0 0.0
        %1243 = vmatprep.subr.mxu0 0.0
        %1244 = vmatpush1.msra.mxu0 0.0
        %1245 = vmatprep.subr.mxu0 0.0
        %1246 = vmatpush1.msra.mxu0 0.0
        %1247 = vmatprep.subr.mxu0 0.0
        %1248 = vmatpush1.msra.mxu0 0.0
        %1249 = vmatprep.mubr.f32.mxu0 0.0
        %1250 = vmatmul.mubr.f32.gmra.mrb[0].mxu0 %v1183
        %v1251 = vpop.f32.mrb[0].mxu0
        %v1252 = vadd.f32 0.0, %v1251
        %v1253 = vpop.f32.mrb[0].mxu0
        %v1254 = vadd.f32 0.0, %v1253
        %1255 = vdwg.mxu0
        %v1256 = vadd.f32 %v1159, %v1252
        %v1257 = vadd.f32 %v1161, %v1254
        %s1258 = scalar_lea.vmem %s9, 24
        %v1259 = vld [vmem:[%s1258] sm:$0xff]
        %1260 = vrot.lane.b32.xlu0 %v898, 1
        %v1261 = vpop.permute.xlu0 %1260
        %1262 = vrot.lane.b32.xlu0 %v900, 1
        %v1263 = vpop.permute.xlu0 %1262
        %1264 = vrot.lane.b32.xlu0 %v899, 1
        %v1265 = vpop.permute.xlu0 %1264
        %1266 = vrot.lane.b32.xlu0 %v901, 1
        %v1267 = vpop.permute.xlu0 %1266
        %vm1268 = vcmp.lt.s32.totalorder %v903, 1
        %v1269 = vsel %vm1268, %v1261, %v1265
        %v1270 = vsel %vm1268, %v1263, %v1267
        %v1271 = vsel %vm1268, %v1265, %v1261
        %v1272 = vsel %vm1268, %v1267, %v1263
        %v1273 = vmul.f32 %v1271, %v953
        %v1274 = vmul.f32 %v1269, %v954
        %v1275 = vmul.f32 %v1272, %v953
        %v1276 = vmul.f32 %v1270, %v954
        %v1278 = vsel %vm1014, %v1259, 0
        %1280 = vmatprep.subr.mxu0 %v1274
        %1281 = vmatpush1.msra.mxu0 %v1273
        %1282 = vmatprep.subr.mxu0 %v1276
        %1283 = vmatpush1.msra.mxu0 %v1275
        %1284 = vmatprep.subr.mxu0 0.0
        %1285 = vmatpush1.msra.mxu0 0.0
        %1286 = vmatprep.subr.mxu0 0.0
        %1287 = vmatpush1.msra.mxu0 0.0
        %1288 = vmatprep.subr.mxu0 0.0
        %1289 = vmatpush1.msra.mxu0 0.0
        %1290 = vmatprep.subr.mxu0 0.0
        %1291 = vmatpush1.msra.mxu0 0.0
        %1292 = vmatprep.subr.mxu0 0.0
        %1293 = vmatpush1.msra.mxu0 0.0
        %1294 = vmatprep.subr.mxu0 0.0
        %1295 = vmatpush1.msra.mxu0 0.0
        %1296 = vmatprep.subr.mxu0 0.0
        %1297 = vmatpush1.msra.mxu0 0.0
        %1298 = vmatprep.subr.mxu0 0.0
        %1299 = vmatpush1.msra.mxu0 0.0
        %1300 = vmatprep.subr.mxu0 0.0
        %1301 = vmatpush1.msra.mxu0 0.0
        %1302 = vmatprep.subr.mxu0 0.0
        %1303 = vmatpush1.msra.mxu0 0.0
        %1304 = vmatprep.subr.mxu0 0.0
        %1305 = vmatpush1.msra.mxu0 0.0
        %1306 = vmatprep.subr.mxu0 0.0
        %1307 = vmatpush1.msra.mxu0 0.0
        %1308 = vmatprep.subr.mxu0 0.0
        %1309 = vmatpush1.msra.mxu0 0.0
        %1310 = vmatprep.subr.mxu0 0.0
        %1311 = vmatpush1.msra.mxu0 0.0
        %1312 = vmatprep.subr.mxu0 0.0
        %1313 = vmatpush1.msra.mxu0 0.0
        %1314 = vmatprep.subr.mxu0 0.0
        %1315 = vmatpush1.msra.mxu0 0.0
        %1316 = vmatprep.subr.mxu0 0.0
        %1317 = vmatpush1.msra.mxu0 0.0
        %1318 = vmatprep.subr.mxu0 0.0
        %1319 = vmatpush1.msra.mxu0 0.0
        %1320 = vmatprep.subr.mxu0 0.0
        %1321 = vmatpush1.msra.mxu0 0.0
        %1322 = vmatprep.subr.mxu0 0.0
        %1323 = vmatpush1.msra.mxu0 0.0
        %1324 = vmatprep.subr.mxu0 0.0
        %1325 = vmatpush1.msra.mxu0 0.0
        %1326 = vmatprep.subr.mxu0 0.0
        %1327 = vmatpush1.msra.mxu0 0.0
        %1328 = vmatprep.subr.mxu0 0.0
        %1329 = vmatpush1.msra.mxu0 0.0
        %1330 = vmatprep.subr.mxu0 0.0
        %1331 = vmatpush1.msra.mxu0 0.0
        %1332 = vmatprep.subr.mxu0 0.0
        %1333 = vmatpush1.msra.mxu0 0.0
        %1334 = vmatprep.subr.mxu0 0.0
        %1335 = vmatpush1.msra.mxu0 0.0
        %1336 = vmatprep.subr.mxu0 0.0
        %1337 = vmatpush1.msra.mxu0 0.0
        %1338 = vmatprep.subr.mxu0 0.0
        %1339 = vmatpush1.msra.mxu0 0.0
        %1340 = vmatprep.subr.mxu0 0.0
        %1341 = vmatpush1.msra.mxu0 0.0
        %1342 = vmatprep.subr.mxu0 0.0
        %1343 = vmatpush1.msra.mxu0 0.0
        %1344 = vmatprep.mubr.f32.mxu0 0.0
        %1345 = vmatmul.mubr.f32.gmra.mrb[0].mxu0 %v1278
        %v1346 = vpop.f32.mrb[0].mxu0
        %v1347 = vadd.f32 0.0, %v1346
        %v1348 = vpop.f32.mrb[0].mxu0
        %v1349 = vadd.f32 0.0, %v1348
        %1350 = vdwg.mxu0
        %v1351 = vadd.f32 %v1256, %v1347
        %v1352 = vadd.f32 %v1257, %v1349
        %s1353 = scalar_lea.vmem %s9, 32
        %v1354 = vld [vmem:[%s1353] sm:$0xff]
        %v1356 = vsel %vm1014, %v1354, 0
        %1358 = vmatprep.subr.mxu0 %v899
        %1359 = vmatpush1.msra.mxu0 %v898
        %1360 = vmatprep.subr.mxu0 %v901
        %1361 = vmatpush1.msra.mxu0 %v900
        %1362 = vmatprep.subr.mxu0 0.0
        %1363 = vmatpush1.msra.mxu0 0.0
        %1364 = vmatprep.subr.mxu0 0.0
        %1365 = vmatpush1.msra.mxu0 0.0
        %1366 = vmatprep.subr.mxu0 0.0
        %1367 = vmatpush1.msra.mxu0 0.0
        %1368 = vmatprep.subr.mxu0 0.0
        %1369 = vmatpush1.msra.mxu0 0.0
        %1370 = vmatprep.subr.mxu0 0.0
        %1371 = vmatpush1.msra.mxu0 0.0
        %1372 = vmatprep.subr.mxu0 0.0
        %1373 = vmatpush1.msra.mxu0 0.0
        %1374 = vmatprep.subr.mxu0 0.0
        %1375 = vmatpush1.msra.mxu0 0.0
        %1376 = vmatprep.subr.mxu0 0.0
        %1377 = vmatpush1.msra.mxu0 0.0
        %1378 = vmatprep.subr.mxu0 0.0
        %1379 = vmatpush1.msra.mxu0 0.0
        %1380 = vmatprep.subr.mxu0 0.0
        %1381 = vmatpush1.msra.mxu0 0.0
        %1382 = vmatprep.subr.mxu0 0.0
        %1383 = vmatpush1.msra.mxu0 0.0
        %1384 = vmatprep.subr.mxu0 0.0
        %1385 = vmatpush1.msra.mxu0 0.0
        %1386 = vmatprep.subr.mxu0 0.0
        %1387 = vmatpush1.msra.mxu0 0.0
        %1388 = vmatprep.subr.mxu0 0.0
        %1389 = vmatpush1.msra.mxu0 0.0
        %1390 = vmatprep.subr.mxu0 0.0
        %1391 = vmatpush1.msra.mxu0 0.0
        %1392 = vmatprep.subr.mxu0 0.0
        %1393 = vmatpush1.msra.mxu0 0.0
        %1394 = vmatprep.subr.mxu0 0.0
        %1395 = vmatpush1.msra.mxu0 0.0
        %1396 = vmatprep.subr.mxu0 0.0
        %1397 = vmatpush1.msra.mxu0 0.0
        %1398 = vmatprep.subr.mxu0 0.0
        %1399 = vmatpush1.msra.mxu0 0.0
        %1400 = vmatprep.subr.mxu0 0.0
        %1401 = vmatpush1.msra.mxu0 0.0
        %1402 = vmatprep.subr.mxu0 0.0
        %1403 = vmatpush1.msra.mxu0 0.0
        %1404 = vmatprep.subr.mxu0 0.0
        %1405 = vmatpush1.msra.mxu0 0.0
        %1406 = vmatprep.subr.mxu0 0.0
        %1407 = vmatpush1.msra.mxu0 0.0
        %1408 = vmatprep.subr.mxu0 0.0
        %1409 = vmatpush1.msra.mxu0 0.0
        %1410 = vmatprep.subr.mxu0 0.0
        %1411 = vmatpush1.msra.mxu0 0.0
        %1412 = vmatprep.subr.mxu0 0.0
        %1413 = vmatpush1.msra.mxu0 0.0
        %1414 = vmatprep.subr.mxu0 0.0
        %1415 = vmatpush1.msra.mxu0 0.0
        %1416 = vmatprep.subr.mxu0 0.0
        %1417 = vmatpush1.msra.mxu0 0.0
        %1418 = vmatprep.subr.mxu0 0.0
        %1419 = vmatpush1.msra.mxu0 0.0
        %1420 = vmatprep.subr.mxu0 0.0
        %1421 = vmatpush1.msra.mxu0 0.0
        %1422 = vmatprep.mubr.f32.mxu0 0.0
        %1423 = vmatmul.mubr.f32.gmra.mrb[0].mxu0 %v1356
        %v1424 = vpop.f32.mrb[0].mxu0
        %v1425 = vadd.f32 0.0, %v1424
        %v1426 = vpop.f32.mrb[0].mxu0
        %v1427 = vadd.f32 0.0, %v1426
        %1428 = vdwg.mxu0
        %v1429 = vadd.f32 %v1351, %v1425
        %v1430 = vadd.f32 %v1352, %v1427
        %s1431 = scalar_lea.vmem %s9, 40
        %v1432 = vld [vmem:[%s1431] sm:$0xff]
        %1433 = vrot.lane.b32.xlu0 %v898, 127
        %v1434 = vpop.permute.xlu0 %1433
        %1435 = vrot.lane.b32.xlu0 %v900, 127
        %v1436 = vpop.permute.xlu0 %1435
        %1437 = vrot.lane.b32.xlu0 %v899, 127
        %v1438 = vpop.permute.xlu0 %1437
        %1439 = vrot.lane.b32.xlu0 %v901, 127
        %v1440 = vpop.permute.xlu0 %1439
        %vm1441 = vcmp.lt.s32.totalorder %v903, 127
        %v1442 = vsel %vm1441, %v1434, %v1438
        %v1443 = vsel %vm1441, %v1436, %v1440
        %v1444 = vsel %vm1441, %v1438, %v1434
        %v1445 = vsel %vm1441, %v1440, %v1436
        %v1446 = vmul.f32 %v1442, %v957
        %v1447 = vmul.f32 %v1444, %v958
        %v1448 = vmul.f32 %v1443, %v957
        %v1449 = vmul.f32 %v1445, %v958
        %v1451 = vsel %vm1014, %v1432, 0
        %1453 = vmatprep.subr.mxu0 %v1447
        %1454 = vmatpush1.msra.mxu0 %v1446
        %1455 = vmatprep.subr.mxu0 %v1449
        %1456 = vmatpush1.msra.mxu0 %v1448
        %1457 = vmatprep.subr.mxu0 0.0
        %1458 = vmatpush1.msra.mxu0 0.0
        %1459 = vmatprep.subr.mxu0 0.0
        %1460 = vmatpush1.msra.mxu0 0.0
        %1461 = vmatprep.subr.mxu0 0.0
        %1462 = vmatpush1.msra.mxu0 0.0
        %1463 = vmatprep.subr.mxu0 0.0
        %1464 = vmatpush1.msra.mxu0 0.0
        %1465 = vmatprep.subr.mxu0 0.0
        %1466 = vmatpush1.msra.mxu0 0.0
        %1467 = vmatprep.subr.mxu0 0.0
        %1468 = vmatpush1.msra.mxu0 0.0
        %1469 = vmatprep.subr.mxu0 0.0
        %1470 = vmatpush1.msra.mxu0 0.0
        %1471 = vmatprep.subr.mxu0 0.0
        %1472 = vmatpush1.msra.mxu0 0.0
        %1473 = vmatprep.subr.mxu0 0.0
        %1474 = vmatpush1.msra.mxu0 0.0
        %1475 = vmatprep.subr.mxu0 0.0
        %1476 = vmatpush1.msra.mxu0 0.0
        %1477 = vmatprep.subr.mxu0 0.0
        %1478 = vmatpush1.msra.mxu0 0.0
        %1479 = vmatprep.subr.mxu0 0.0
        %1480 = vmatpush1.msra.mxu0 0.0
        %1481 = vmatprep.subr.mxu0 0.0
        %1482 = vmatpush1.msra.mxu0 0.0
        %1483 = vmatprep.subr.mxu0 0.0
        %1484 = vmatpush1.msra.mxu0 0.0
        %1485 = vmatprep.subr.mxu0 0.0
        %1486 = vmatpush1.msra.mxu0 0.0
        %1487 = vmatprep.subr.mxu0 0.0
        %1488 = vmatpush1.msra.mxu0 0.0
        %1489 = vmatprep.subr.mxu0 0.0
        %1490 = vmatpush1.msra.mxu0 0.0
        %1491 = vmatprep.subr.mxu0 0.0
        %1492 = vmatpush1.msra.mxu0 0.0
        %1493 = vmatprep.subr.mxu0 0.0
        %1494 = vmatpush1.msra.mxu0 0.0
        %1495 = vmatprep.subr.mxu0 0.0
        %1496 = vmatpush1.msra.mxu0 0.0
        %1497 = vmatprep.subr.mxu0 0.0
        %1498 = vmatpush1.msra.mxu0 0.0
        %1499 = vmatprep.subr.mxu0 0.0
        %1500 = vmatpush1.msra.mxu0 0.0
        %1501 = vmatprep.subr.mxu0 0.0
        %1502 = vmatpush1.msra.mxu0 0.0
        %1503 = vmatprep.subr.mxu0 0.0
        %1504 = vmatpush1.msra.mxu0 0.0
        %1505 = vmatprep.subr.mxu0 0.0
        %1506 = vmatpush1.msra.mxu0 0.0
        %1507 = vmatprep.subr.mxu0 0.0
        %1508 = vmatpush1.msra.mxu0 0.0
        %1509 = vmatprep.subr.mxu0 0.0
        %1510 = vmatpush1.msra.mxu0 0.0
        %1511 = vmatprep.subr.mxu0 0.0
        %1512 = vmatpush1.msra.mxu0 0.0
        %1513 = vmatprep.subr.mxu0 0.0
        %1514 = vmatpush1.msra.mxu0 0.0
        %1515 = vmatprep.subr.mxu0 0.0
        %1516 = vmatpush1.msra.mxu0 0.0
        %1517 = vmatprep.mubr.f32.mxu0 0.0
        %1518 = vmatmul.mubr.f32.gmra.mrb[0].mxu0 %v1451
        %v1519 = vpop.f32.mrb[0].mxu0
        %v1520 = vadd.f32 0.0, %v1519
        %v1521 = vpop.f32.mrb[0].mxu0
        %v1522 = vadd.f32 0.0, %v1521
        %1523 = vdwg.mxu0
        %v1524 = vadd.f32 %v1429, %v1520
        %v1525 = vadd.f32 %v1430, %v1522
        %s1526 = scalar_lea.vmem %s9, 48
        %v1527 = vld [vmem:[%s1526] sm:$0xff]
        %1528 = vrot.lane.b32.xlu0 %v898, 113
        %v1529 = vpop.permute.xlu0 %1528
        %1530 = vrot.lane.b32.xlu0 %v900, 113
        %v1531 = vpop.permute.xlu0 %1530
        %1532 = vrot.lane.b32.xlu0 %v899, 113
        %v1533 = vpop.permute.xlu0 %1532
        %1534 = vrot.lane.b32.xlu0 %v901, 113
        %v1535 = vpop.permute.xlu0 %1534
        %vm1536 = vcmp.lt.s32.totalorder %v903, 113
        %v1537 = vsel %vm1536, %v1529, %v1533
        %v1538 = vsel %vm1536, %v1531, %v1535
        %v1539 = vsel %vm1536, %v1533, %v1529
        %v1540 = vsel %vm1536, %v1535, %v1531
        %v1541 = vmul.f32 %v1537, %v965
        %v1542 = vmul.f32 %v1539, %v966
        %v1543 = vmul.f32 %v1538, %v965
        %v1544 = vmul.f32 %v1540, %v966
        %v1546 = vsel %vm1014, %v1527, 0
        %1548 = vmatprep.subr.mxu0 %v1542
        %1549 = vmatpush1.msra.mxu0 %v1541
        %1550 = vmatprep.subr.mxu0 %v1544
        %1551 = vmatpush1.msra.mxu0 %v1543
        %1552 = vmatprep.subr.mxu0 0.0
        %1553 = vmatpush1.msra.mxu0 0.0
        %1554 = vmatprep.subr.mxu0 0.0
        %1555 = vmatpush1.msra.mxu0 0.0
        %1556 = vmatprep.subr.mxu0 0.0
        %1557 = vmatpush1.msra.mxu0 0.0
        %1558 = vmatprep.subr.mxu0 0.0
        %1559 = vmatpush1.msra.mxu0 0.0
        %1560 = vmatprep.subr.mxu0 0.0
        %1561 = vmatpush1.msra.mxu0 0.0
        %1562 = vmatprep.subr.mxu0 0.0
        %1563 = vmatpush1.msra.mxu0 0.0
        %1564 = vmatprep.subr.mxu0 0.0
        %1565 = vmatpush1.msra.mxu0 0.0
        %1566 = vmatprep.subr.mxu0 0.0
        %1567 = vmatpush1.msra.mxu0 0.0
        %1568 = vmatprep.subr.mxu0 0.0
        %1569 = vmatpush1.msra.mxu0 0.0
        %1570 = vmatprep.subr.mxu0 0.0
        %1571 = vmatpush1.msra.mxu0 0.0
        %1572 = vmatprep.subr.mxu0 0.0
        %1573 = vmatpush1.msra.mxu0 0.0
        %1574 = vmatprep.subr.mxu0 0.0
        %1575 = vmatpush1.msra.mxu0 0.0
        %1576 = vmatprep.subr.mxu0 0.0
        %1577 = vmatpush1.msra.mxu0 0.0
        %1578 = vmatprep.subr.mxu0 0.0
        %1579 = vmatpush1.msra.mxu0 0.0
        %1580 = vmatprep.subr.mxu0 0.0
        %1581 = vmatpush1.msra.mxu0 0.0
        %1582 = vmatprep.subr.mxu0 0.0
        %1583 = vmatpush1.msra.mxu0 0.0
        %1584 = vmatprep.subr.mxu0 0.0
        %1585 = vmatpush1.msra.mxu0 0.0
        %1586 = vmatprep.subr.mxu0 0.0
        %1587 = vmatpush1.msra.mxu0 0.0
        %1588 = vmatprep.subr.mxu0 0.0
        %1589 = vmatpush1.msra.mxu0 0.0
        %1590 = vmatprep.subr.mxu0 0.0
        %1591 = vmatpush1.msra.mxu0 0.0
        %1592 = vmatprep.subr.mxu0 0.0
        %1593 = vmatpush1.msra.mxu0 0.0
        %1594 = vmatprep.subr.mxu0 0.0
        %1595 = vmatpush1.msra.mxu0 0.0
        %1596 = vmatprep.subr.mxu0 0.0
        %1597 = vmatpush1.msra.mxu0 0.0
        %1598 = vmatprep.subr.mxu0 0.0
        %1599 = vmatpush1.msra.mxu0 0.0
        %1600 = vmatprep.subr.mxu0 0.0
        %1601 = vmatpush1.msra.mxu0 0.0
        %1602 = vmatprep.subr.mxu0 0.0
        %1603 = vmatpush1.msra.mxu0 0.0
        %1604 = vmatprep.subr.mxu0 0.0
        %1605 = vmatpush1.msra.mxu0 0.0
        %1606 = vmatprep.subr.mxu0 0.0
        %1607 = vmatpush1.msra.mxu0 0.0
        %1608 = vmatprep.subr.mxu0 0.0
        %1609 = vmatpush1.msra.mxu0 0.0
        %1610 = vmatprep.subr.mxu0 0.0
        %1611 = vmatpush1.msra.mxu0 0.0
        %1612 = vmatprep.mubr.f32.mxu0 0.0
        %1613 = vmatmul.mubr.f32.gmra.mrb[0].mxu0 %v1546
        %v1614 = vpop.f32.mrb[0].mxu0
        %v1615 = vadd.f32 0.0, %v1614
        %v1616 = vpop.f32.mrb[0].mxu0
        %v1617 = vadd.f32 0.0, %v1616
        %1618 = vdwg.mxu0
        %v1619 = vadd.f32 %v1524, %v1615
        %v1620 = vadd.f32 %v1525, %v1617
        %s1621 = scalar_lea.vmem %s9, 56
        %v1622 = vld [vmem:[%s1621] sm:$0xff]
        %1623 = vrot.lane.b32.xlu0 %v898, 112
        %v1624 = vpop.permute.xlu0 %1623
        %1625 = vrot.lane.b32.xlu0 %v900, 112
        %v1626 = vpop.permute.xlu0 %1625
        %1627 = vrot.lane.b32.xlu0 %v899, 112
        %v1628 = vpop.permute.xlu0 %1627
        %1629 = vrot.lane.b32.xlu0 %v901, 112
        %v1630 = vpop.permute.xlu0 %1629
        %vm1631 = vcmp.lt.s32.totalorder %v903, 112
        %v1632 = vsel %vm1631, %v1624, %v1628
        %v1633 = vsel %vm1631, %v1626, %v1630
        %v1634 = vsel %vm1631, %v1628, %v1624
        %v1635 = vsel %vm1631, %v1630, %v1626
        %v1636 = vmul.f32 %v1632, %v969
        %v1637 = vmul.f32 %v1634, %v970
        %v1638 = vmul.f32 %v1633, %v969
        %v1639 = vmul.f32 %v1635, %v970
        %v1641 = vsel %vm1014, %v1622, 0
        %1643 = vmatprep.subr.mxu0 %v1637
        %1644 = vmatpush1.msra.mxu0 %v1636
        %1645 = vmatprep.subr.mxu0 %v1639
        %1646 = vmatpush1.msra.mxu0 %v1638
        %1647 = vmatprep.subr.mxu0 0.0
        %1648 = vmatpush1.msra.mxu0 0.0
        %1649 = vmatprep.subr.mxu0 0.0
        %1650 = vmatpush1.msra.mxu0 0.0
        %1651 = vmatprep.subr.mxu0 0.0
        %1652 = vmatpush1.msra.mxu0 0.0
        %1653 = vmatprep.subr.mxu0 0.0
        %1654 = vmatpush1.msra.mxu0 0.0
        %1655 = vmatprep.subr.mxu0 0.0
        %1656 = vmatpush1.msra.mxu0 0.0
        %1657 = vmatprep.subr.mxu0 0.0
        %1658 = vmatpush1.msra.mxu0 0.0
        %1659 = vmatprep.subr.mxu0 0.0
        %1660 = vmatpush1.msra.mxu0 0.0
        %1661 = vmatprep.subr.mxu0 0.0
        %1662 = vmatpush1.msra.mxu0 0.0
        %1663 = vmatprep.subr.mxu0 0.0
        %1664 = vmatpush1.msra.mxu0 0.0
        %1665 = vmatprep.subr.mxu0 0.0
        %1666 = vmatpush1.msra.mxu0 0.0
        %1667 = vmatprep.subr.mxu0 0.0
        %1668 = vmatpush1.msra.mxu0 0.0
        %1669 = vmatprep.subr.mxu0 0.0
        %1670 = vmatpush1.msra.mxu0 0.0
        %1671 = vmatprep.subr.mxu0 0.0
        %1672 = vmatpush1.msra.mxu0 0.0
        %1673 = vmatprep.subr.mxu0 0.0
        %1674 = vmatpush1.msra.mxu0 0.0
        %1675 = vmatprep.subr.mxu0 0.0
        %1676 = vmatpush1.msra.mxu0 0.0
        %1677 = vmatprep.subr.mxu0 0.0
        %1678 = vmatpush1.msra.mxu0 0.0
        %1679 = vmatprep.subr.mxu0 0.0
        %1680 = vmatpush1.msra.mxu0 0.0
        %1681 = vmatprep.subr.mxu0 0.0
        %1682 = vmatpush1.msra.mxu0 0.0
        %1683 = vmatprep.subr.mxu0 0.0
        %1684 = vmatpush1.msra.mxu0 0.0
        %1685 = vmatprep.subr.mxu0 0.0
        %1686 = vmatpush1.msra.mxu0 0.0
        %1687 = vmatprep.subr.mxu0 0.0
        %1688 = vmatpush1.msra.mxu0 0.0
        %1689 = vmatprep.subr.mxu0 0.0
        %1690 = vmatpush1.msra.mxu0 0.0
        %1691 = vmatprep.subr.mxu0 0.0
        %1692 = vmatpush1.msra.mxu0 0.0
        %1693 = vmatprep.subr.mxu0 0.0
        %1694 = vmatpush1.msra.mxu0 0.0
        %1695 = vmatprep.subr.mxu0 0.0
        %1696 = vmatpush1.msra.mxu0 0.0
        %1697 = vmatprep.subr.mxu0 0.0
        %1698 = vmatpush1.msra.mxu0 0.0
        %1699 = vmatprep.subr.mxu0 0.0
        %1700 = vmatpush1.msra.mxu0 0.0
        %1701 = vmatprep.subr.mxu0 0.0
        %1702 = vmatpush1.msra.mxu0 0.0
        %1703 = vmatprep.subr.mxu0 0.0
        %1704 = vmatpush1.msra.mxu0 0.0
        %1705 = vmatprep.subr.mxu0 0.0
        %1706 = vmatpush1.msra.mxu0 0.0
        %1707 = vmatprep.mubr.f32.mxu0 0.0
        %1708 = vmatmul.mubr.f32.gmra.mrb[0].mxu0 %v1641
        %v1709 = vpop.f32.mrb[0].mxu0
        %v1710 = vadd.f32 0.0, %v1709
        %v1711 = vpop.f32.mrb[0].mxu0
        %v1712 = vadd.f32 0.0, %v1711
        %1713 = vdwg.mxu0
        %v1714 = vadd.f32 %v1619, %v1710
        %v1715 = vadd.f32 %v1620, %v1712
        %s1716 = scalar_lea.vmem %s9, 64
        %v1717 = vld [vmem:[%s1716] sm:$0xff]
        %1718 = vrot.lane.b32.xlu0 %v898, 111
        %v1719 = vpop.permute.xlu0 %1718
        %1720 = vrot.lane.b32.xlu0 %v900, 111
        %v1721 = vpop.permute.xlu0 %1720
        %1722 = vrot.lane.b32.xlu0 %v899, 111
        %v1723 = vpop.permute.xlu0 %1722
        %1724 = vrot.lane.b32.xlu0 %v901, 111
        %v1725 = vpop.permute.xlu0 %1724
        %vm1726 = vcmp.lt.s32.totalorder %v903, 111
        %v1727 = vsel %vm1726, %v1719, %v1723
        %v1728 = vsel %vm1726, %v1721, %v1725
        %v1729 = vsel %vm1726, %v1723, %v1719
        %v1730 = vsel %vm1726, %v1725, %v1721
        %v1731 = vmul.f32 %v1727, %v975
        %v1732 = vmul.f32 %v1729, %v976
        %v1733 = vmul.f32 %v1728, %v975
        %v1734 = vmul.f32 %v1730, %v976
        %v1736 = vsel %vm1014, %v1717, 0
        %1738 = vmatprep.subr.mxu0 %v1732
        %1739 = vmatpush1.msra.mxu0 %v1731
        %1740 = vmatprep.subr.mxu0 %v1734
        %1741 = vmatpush1.msra.mxu0 %v1733
        %1742 = vmatprep.subr.mxu0 0.0
        %1743 = vmatpush1.msra.mxu0 0.0
        %1744 = vmatprep.subr.mxu0 0.0
        %1745 = vmatpush1.msra.mxu0 0.0
        %1746 = vmatprep.subr.mxu0 0.0
        %1747 = vmatpush1.msra.mxu0 0.0
        %1748 = vmatprep.subr.mxu0 0.0
        %1749 = vmatpush1.msra.mxu0 0.0
        %1750 = vmatprep.subr.mxu0 0.0
        %1751 = vmatpush1.msra.mxu0 0.0
        %1752 = vmatprep.subr.mxu0 0.0
        %1753 = vmatpush1.msra.mxu0 0.0
        %1754 = vmatprep.subr.mxu0 0.0
        %1755 = vmatpush1.msra.mxu0 0.0
        %1756 = vmatprep.subr.mxu0 0.0
        %1757 = vmatpush1.msra.mxu0 0.0
        %1758 = vmatprep.subr.mxu0 0.0
        %1759 = vmatpush1.msra.mxu0 0.0
        %1760 = vmatprep.subr.mxu0 0.0
        %1761 = vmatpush1.msra.mxu0 0.0
        %1762 = vmatprep.subr.mxu0 0.0
        %1763 = vmatpush1.msra.mxu0 0.0
        %1764 = vmatprep.subr.mxu0 0.0
        %1765 = vmatpush1.msra.mxu0 0.0
        %1766 = vmatprep.subr.mxu0 0.0
        %1767 = vmatpush1.msra.mxu0 0.0
        %1768 = vmatprep.subr.mxu0 0.0
        %1769 = vmatpush1.msra.mxu0 0.0
        %1770 = vmatprep.subr.mxu0 0.0
        %1771 = vmatpush1.msra.mxu0 0.0
        %1772 = vmatprep.subr.mxu0 0.0
        %1773 = vmatpush1.msra.mxu0 0.0
        %1774 = vmatprep.subr.mxu0 0.0
        %1775 = vmatpush1.msra.mxu0 0.0
        %1776 = vmatprep.subr.mxu0 0.0
        %1777 = vmatpush1.msra.mxu0 0.0
        %1778 = vmatprep.subr.mxu0 0.0
        %1779 = vmatpush1.msra.mxu0 0.0
        %1780 = vmatprep.subr.mxu0 0.0
        %1781 = vmatpush1.msra.mxu0 0.0
        %1782 = vmatprep.subr.mxu0 0.0
        %1783 = vmatpush1.msra.mxu0 0.0
        %1784 = vmatprep.subr.mxu0 0.0
        %1785 = vmatpush1.msra.mxu0 0.0
        %1786 = vmatprep.subr.mxu0 0.0
        %1787 = vmatpush1.msra.mxu0 0.0
        %1788 = vmatprep.subr.mxu0 0.0
        %1789 = vmatpush1.msra.mxu0 0.0
        %1790 = vmatprep.subr.mxu0 0.0
        %1791 = vmatpush1.msra.mxu0 0.0
        %1792 = vmatprep.subr.mxu0 0.0
        %1793 = vmatpush1.msra.mxu0 0.0
        %1794 = vmatprep.subr.mxu0 0.0
        %1795 = vmatpush1.msra.mxu0 0.0
        %1796 = vmatprep.subr.mxu0 0.0
        %1797 = vmatpush1.msra.mxu0 0.0
        %1798 = vmatprep.subr.mxu0 0.0
        %1799 = vmatpush1.msra.mxu0 0.0
        %1800 = vmatprep.subr.mxu0 0.0
        %1801 = vmatpush1.msra.mxu0 0.0
        %1802 = vmatprep.mubr.f32.mxu0 0.0
        %1803 = vmatmul.mubr.f32.gmra.mrb[0].mxu0 %v1736
        %v1804 = vpop.f32.mrb[0].mxu0
        %v1805 = vadd.f32 0.0, %v1804
        %v1806 = vpop.f32.mrb[0].mxu0
        %v1807 = vadd.f32 0.0, %v1806
        %1808 = vdwg.mxu0
        %v1809 = vadd.f32 %v1714, %v1805
        %v1810 = vadd.f32 %v1715, %v1807
        %v1811 = vld [vmem:[%s10] sm:$0xff]
        %1813 = vset.pattern.permute.xlu0 0
        %1814 = vperm.xlu0 %1813, %v1811
        %v1815 = vpop.permute.xlu0 %1814
        %v1817 = vadd.f32 %v1809, %v1815
        %v1818 = vadd.f32 %v1810, %v1815
        %v1819 = vmax.f32 %v1817, 0.0
        %v1820 = vmax.f32 %v1818, 0.0
        %v1821 = vld [vmem:[%s11] sm:$0xff]
        %1822 = vrot.lane.b32.xlu0 %v1819, 17
        %v1823 = vpop.permute.xlu0 %1822
        %1824 = vrot.lane.b32.xlu0 %v1820, 17
        %v1825 = vpop.permute.xlu0 %1824
        %v1826 = vsel %vm986, %v1823, %v1825
        %v1827 = vsel %vm986, %v1825, %v1823
        %v1828 = vmul.f32 %v1827, %v937
        %v1829 = vmul.f32 %v1826, %v938
        %1831 = vset.pattern.permute.xlu0 0
        %1832 = vperm.xlu0 %1831, %v1821
        %v1833 = vpop.permute.xlu0 %1832
        %v1835 = vmul.f32 %v1833, %v1828
        %v1836 = vmul.f32 %v1833, %v1829
        %v1837 = vadd.f32 %v1835, 0.0
        %v1838 = vadd.f32 %v1836, 0.0
        %s1839 = scalar_lea.vmem %s11, 8
        %v1840 = vld [vmem:[%s1839] sm:$0xff]
        %1841 = vrot.lane.b32.xlu0 %v1819, 16
        %v1842 = vpop.permute.xlu0 %1841
        %1843 = vrot.lane.b32.xlu0 %v1820, 16
        %v1844 = vpop.permute.xlu0 %1843
        %v1845 = vsel %vm1005, %v1842, %v1844
        %v1846 = vsel %vm1005, %v1844, %v1842
        %v1847 = vmul.f32 %v1846, %v941
        %v1848 = vmul.f32 %v1845, %v942
        %1850 = vset.pattern.permute.xlu0 0
        %1851 = vperm.xlu0 %1850, %v1840
        %v1852 = vpop.permute.xlu0 %1851
        %v1854 = vmul.f32 %v1852, %v1847
        %v1855 = vmul.f32 %v1852, %v1848
        %v1856 = vadd.f32 %v1837, %v1854
        %v1857 = vadd.f32 %v1838, %v1855
        %s1858 = scalar_lea.vmem %s11, 16
        %v1859 = vld [vmem:[%s1858] sm:$0xff]
        %1860 = vrot.lane.b32.xlu0 %v1819, 15
        %v1861 = vpop.permute.xlu0 %1860
        %1862 = vrot.lane.b32.xlu0 %v1820, 15
        %v1863 = vpop.permute.xlu0 %1862
        %v1864 = vsel %vm1173, %v1861, %v1863
        %v1865 = vsel %vm1173, %v1863, %v1861
        %v1866 = vmul.f32 %v1865, %v949
        %v1867 = vmul.f32 %v1864, %v950
        %1869 = vset.pattern.permute.xlu0 0
        %1870 = vperm.xlu0 %1869, %v1859
        %v1871 = vpop.permute.xlu0 %1870
        %v1873 = vmul.f32 %v1871, %v1866
        %v1874 = vmul.f32 %v1871, %v1867
        %v1875 = vadd.f32 %v1856, %v1873
        %v1876 = vadd.f32 %v1857, %v1874
        %s1877 = scalar_lea.vmem %s11, 24
        %v1878 = vld [vmem:[%s1877] sm:$0xff]
        %1879 = vrot.lane.b32.xlu0 %v1819, 1
        %v1880 = vpop.permute.xlu0 %1879
        %1881 = vrot.lane.b32.xlu0 %v1820, 1
        %v1882 = vpop.permute.xlu0 %1881
        %v1883 = vsel %vm1268, %v1880, %v1882
        %v1884 = vsel %vm1268, %v1882, %v1880
        %v1885 = vmul.f32 %v1884, %v953
        %v1886 = vmul.f32 %v1883, %v954
        %1888 = vset.pattern.permute.xlu0 0
        %1889 = vperm.xlu0 %1888, %v1878
        %v1890 = vpop.permute.xlu0 %1889
        %v1892 = vmul.f32 %v1890, %v1885
        %v1893 = vmul.f32 %v1890, %v1886
        %v1894 = vadd.f32 %v1875, %v1892
        %v1895 = vadd.f32 %v1876, %v1893
        %s1896 = scalar_lea.vmem %s11, 32
        %v1897 = vld [vmem:[%s1896] sm:$0xff]
        %1899 = vset.pattern.permute.xlu0 0
        %1900 = vperm.xlu0 %1899, %v1897
        %v1901 = vpop.permute.xlu0 %1900
        %v1903 = vmul.f32 %v1901, %v1819
        %v1904 = vmul.f32 %v1901, %v1820
        %v1905 = vadd.f32 %v1894, %v1903
        %v1906 = vadd.f32 %v1895, %v1904
        %s1907 = scalar_lea.vmem %s11, 40
        %v1908 = vld [vmem:[%s1907] sm:$0xff]
        %1909 = vrot.lane.b32.xlu0 %v1819, 127
        %v1910 = vpop.permute.xlu0 %1909
        %1911 = vrot.lane.b32.xlu0 %v1820, 127
        %v1912 = vpop.permute.xlu0 %1911
        %v1913 = vsel %vm1441, %v1910, %v1912
        %v1914 = vsel %vm1441, %v1912, %v1910
        %v1915 = vmul.f32 %v1913, %v957
        %v1916 = vmul.f32 %v1914, %v958
        %1918 = vset.pattern.permute.xlu0 0
        %1919 = vperm.xlu0 %1918, %v1908
        %v1920 = vpop.permute.xlu0 %1919
        %v1922 = vmul.f32 %v1920, %v1915
        %v1923 = vmul.f32 %v1920, %v1916
        %v1924 = vadd.f32 %v1905, %v1922
        %v1925 = vadd.f32 %v1906, %v1923
        %s1926 = scalar_lea.vmem %s11, 48
        %v1927 = vld [vmem:[%s1926] sm:$0xff]
        %1928 = vrot.lane.b32.xlu0 %v1819, 113
        %v1929 = vpop.permute.xlu0 %1928
        %1930 = vrot.lane.b32.xlu0 %v1820, 113
        %v1931 = vpop.permute.xlu0 %1930
        %v1932 = vsel %vm1536, %v1929, %v1931
        %v1933 = vsel %vm1536, %v1931, %v1929
        %v1934 = vmul.f32 %v1932, %v965
        %v1935 = vmul.f32 %v1933, %v966
        %1937 = vset.pattern.permute.xlu0 0
        %1938 = vperm.xlu0 %1937, %v1927
        %v1939 = vpop.permute.xlu0 %1938
        %v1941 = vmul.f32 %v1939, %v1934
        %v1942 = vmul.f32 %v1939, %v1935
        %v1943 = vadd.f32 %v1924, %v1941
        %v1944 = vadd.f32 %v1925, %v1942
        %s1945 = scalar_lea.vmem %s11, 56
        %v1946 = vld [vmem:[%s1945] sm:$0xff]
        %1947 = vrot.lane.b32.xlu0 %v1819, 112
        %v1948 = vpop.permute.xlu0 %1947
        %1949 = vrot.lane.b32.xlu0 %v1820, 112
        %v1950 = vpop.permute.xlu0 %1949
        %v1951 = vsel %vm1631, %v1948, %v1950
        %v1952 = vsel %vm1631, %v1950, %v1948
        %v1953 = vmul.f32 %v1951, %v969
        %v1954 = vmul.f32 %v1952, %v970
        %1956 = vset.pattern.permute.xlu0 0
        %1957 = vperm.xlu0 %1956, %v1946
        %v1958 = vpop.permute.xlu0 %1957
        %v1960 = vmul.f32 %v1958, %v1953
        %v1961 = vmul.f32 %v1958, %v1954
        %v1962 = vadd.f32 %v1943, %v1960
        %v1963 = vadd.f32 %v1944, %v1961
        %s1964 = scalar_lea.vmem %s11, 64
        %v1965 = vld [vmem:[%s1964] sm:$0xff]
        %1966 = vrot.lane.b32.xlu0 %v1819, 111
        %v1967 = vpop.permute.xlu0 %1966
        %1968 = vrot.lane.b32.xlu0 %v1820, 111
        %v1969 = vpop.permute.xlu0 %1968
        %v1970 = vsel %vm1726, %v1967, %v1969
        %v1971 = vsel %vm1726, %v1969, %v1967
        %v1972 = vmul.f32 %v1970, %v975
        %v1973 = vmul.f32 %v1971, %v976
        %1975 = vset.pattern.permute.xlu0 0
        %1976 = vperm.xlu0 %1975, %v1965
        %v1977 = vpop.permute.xlu0 %1976
        %v1979 = vmul.f32 %v1977, %v1972
        %v1980 = vmul.f32 %v1977, %v1973
        %v1981 = vadd.f32 %v1962, %v1979
        %v1982 = vadd.f32 %v1963, %v1980
        %v1983 = vrot.slane %v1981, 4
        %v1984 = vadd.f32 %v1981, %v1983
        %v1985 = vrot.slane %v1984, 2
        %v1986 = vadd.f32 %v1984, %v1985
        %v1987 = vrot.slane %v1986, 1
        %v1988 = vadd.f32 %v1986, %v1987
        %v1989 = vrot.slane %v1982, 4
        %v1990 = vadd.f32 %v1982, %v1989
        %v1991 = vrot.slane %v1990, 2
        %v1992 = vadd.f32 %v1990, %v1991
        %v1993 = vrot.slane %v1992, 1
        %v1994 = vadd.f32 %v1992, %v1993
        %s1995 = sld [smem:[#allocation2]]
        %v1996 = vstv %s1995
        %v1997 = vadd.f32 %v1988, %v1996
        %v1998 = vadd.f32 %v1994, %v1996
        %v1999 = vmax.f32 %v1997, -1.0
        %v2000 = vmax.f32 %v1998, -1.0
        %v2001 = vmin.f32 %v1999, 1.0
        %v2002 = vmin.f32 %v2000, 1.0
        %v2005 = vcombine.low %v2001, %v2002
        %v2007 = vunpack.c.l.s4 1966171168
        %v2008 = vunpack.c.0.s8 %v2007
        %v2009 = vlaneseq
        %v2010 = vshrl.u32 %v2009, 7
        %v2011 = vsub.s32 %v2008, %v2010
        %v2012 = vrot.slane %v2005, %v2011
        %v2014 = vunpack.c.l.s4 1966171168
        %v2015 = vunpack.c.0.s8 %v2014
        %v2016 = vlaneseq
        %v2017 = vshrl.u32 %v2016, 7
        %v2018 = vsub.s32 %v2015, %v2017
        %v2019 = vrot.slane %v2012, %v2018
        %v2021 = vlaneseq
        %vm2022 = vcmp.ge.s32.totalorder %v2021, 0
        %vm2023 = vcmp.lt.s32.totalorder %v2021, 256
        %vm2024 = vmand %vm2022, %vm2023
        %2025 = vst.msk [vmem:[%s479] sm:$0x3] %vm2024, %v2019
        %s2026 = sand.u32 %s329, 1
        %s2027 = scalar_lea.sflag [#allocation4], %s2026
        %s2028 = sand.u32 %s329, 1
        %s2029 = smul.addr %s2028, 2
        %s2030 = scalar_lea.vmem [#allocation3], %s2029
        // Predicated region
        $region73: #{tpu_custom_call.1} parent=71 // pred_check
          %p2031 = pneg %p339
        $region74: #{tpu_custom_call.1} parent=71 // pred_check_branch
          %2033 = sbr.rel (%p2031) target = $region76
        $region75: #{tpu_custom_call.1} parent=71 // pred_region
          %s2035 = ssub.s32 32, 32
          %2036 = vsyncadd %s2027, %s2035
          %s2037 = smul.addr %s28, 2
          %s2038 = smul.addr %s2037, 16
          %s2039 = scalar_lea.hbm %s13, %s2038
          %s2041 = sshll.u32 %s2030, 4
          %s2042 = int_to_ptr.vmem [resolvable:$true] %s2041
          %2044 = dma.vmem_to_hbm [thread:$0]  %s2042, 32, %s2039, %s2027
        $region76: #{tpu_custom_call.1} parent=71 // pred_fallthru
          _
      $region72: #{tpu_custom_call.1} parent=5 // pred_fallthru
        _
      %p2045 = scmp.le.s32.totalorder 2, %s23
      // Predicated region
      $region77: #{tpu_custom_call.1} parent=5 // pred_check
        %p2046 = pneg %p2045
      $region78: #{tpu_custom_call.1} parent=5 // pred_check_branch
        %2048 = sbr.rel (%p2046) target = $region80
      $region79: #{tpu_custom_call.1} parent=5 // pred_region
        %s2049 = ssub.s32 %s23, 2
        // Predicated region
        $region81: #{tpu_custom_call.1} parent=79 // pred_check
          %p2050 = pneg %p345
        $region82: #{tpu_custom_call.1} parent=79 // pred_check_branch
          %2052 = sbr.rel (%p2050) target = $region84
        $region83: #{tpu_custom_call.1} parent=79 // pred_region
          %s2053 = sand.u32 %s330, 1
          %s2054 = scalar_lea.sflag [#allocation4], %s2053
          %s2055 = sand.u32 %s330, 1
          %s2056 = smul.addr %s2055, 2
          %s2057 = scalar_lea.vmem [#allocation3], %s2056
          %2058 = dma.done %s2054, 32
        $region84: #{tpu_custom_call.1} parent=79 // pred_fallthru
          _
      $region80: #{tpu_custom_call.1} parent=5 // pred_fallthru
        _
    $region6: #{tpu_custom_call.1} parent=1 // loop_footer
      %s27 = sadd.s32 1, %s23
    $region7: #{tpu_custom_call.1} parent=1 // loop_footer_branch
      %22 = sbr.rel target = $region3
    $region8: #{tpu_custom_call.1} parent=1 // loop_exit
      _
    %2059 = vsyncpa [#allocation4], 1
    %s2060 = scalar_lea.sflag [#allocation4], 1
    %2061 = vsyncpa %s2060, 1

</llo_original>
